<compile_context>
chip_gen: v5e
topology: v5e:2x2
jax: 0.10.0
libtpu: 0.0.40
codegen_flags: <defaults>
</compile_context>

<pallas_src>
import functools

import jax
import jax.numpy as jnp
from jax.experimental import pallas as pl
from jax.experimental.pallas import tpu as pltpu


def _vq_kernel(z_ref, et_ref, esq_ref, zq_ref, inds_ref, sse_ref):
    # z_ref:    (1, C, Lt)  current token tile, channel-major
    # et_ref:   (C, N)      codebook, transposed (resident every step)
    # esq_ref:  (N, 1)      precomputed ||e_n||^2
    # zq_ref:   (1, C, Lt)  quantized tokens (channel-major)
    # inds_ref: (1, 1, Lt)  argmin indices (lane-dense)
    # sse_ref:  (1, 1, Lt)  per-token sum of squared error
    z = z_ref[0].astype(jnp.float32)          # (C, Lt)
    e_t = et_ref[...].astype(jnp.float32)     # (C, N)
    e_sq = esq_ref[...]                       # (N, 1) f32

    n_e = e_t.shape[1]

    # e · z, contracting over C (MXU): (N, Lt)
    ez = jax.lax.dot_general(
        e_t, z, (((0,), (0,)), ((), ())),
        preferred_element_type=jnp.float32)

    # ||z||^2 term omitted — it is constant per token and does not affect argmin.
    d = e_sq - 2.0 * ez                       # (N, Lt)

    # argmin over the codebook axis (sublane direction), first occurrence wins.
    iota_n = jax.lax.broadcasted_iota(jnp.int32, d.shape, 0)      # (N, Lt)
    d_min = jnp.min(d, axis=0, keepdims=True)                     # (1, Lt)
    inds = jnp.min(jnp.where(d == d_min, iota_n, n_e),
                   axis=0, keepdims=True).astype(jnp.int32)       # (1, Lt)

    # Gather codebook rows via one-hot matmul (MXU, exact f32 rows).
    onehot = (iota_n == inds).astype(jnp.float32)                 # (N, Lt)
    z_q = jax.lax.dot_general(
        e_t, onehot, (((1,), (0,)), ((), ())),
        preferred_element_type=jnp.float32)                       # (C, Lt)

    zq_ref[0] = z_q.astype(zq_ref.dtype)
    inds_ref[0] = inds

    diff = z_q - z
    sse_ref[0] = jnp.sum(diff * diff, axis=0, keepdims=True)      # (1, Lt)


@functools.partial(jax.jit, static_argnames=("beta", "token_tile"))
def vector_quantizer_forward(z, embedding, *, beta=0.1, token_tile=1024):
    """z: (B, C, L) float32, embedding: (n_e, e_dim) float32, C == e_dim."""
    B, C, L = z.shape
    n_e, e_dim = embedding.shape
    assert C == e_dim, "channel dim must equal e_dim"

    L_tile = min(L, token_tile)
    assert L % L_tile == 0, "L must be divisible by the token tile"
    assert L_tile == L or L_tile % 128 == 0, "token tile must be lane-aligned"
    num_l_tiles = L // L_tile

    # Hoisted, computed once: transposed codebook and ||e||^2.
    e_t = jnp.transpose(embedding.astype(jnp.float32), (1, 0))               # (C, N)
    e_sq = jnp.sum(embedding.astype(jnp.float32) ** 2, axis=1, keepdims=True)  # (N, 1)

    zq, inds3d, sse_tok = pl.pallas_call(
        _vq_kernel,
        out_shape=(
            jax.ShapeDtypeStruct((B, C, L), z.dtype),
            jax.ShapeDtypeStruct((B, 1, L), jnp.int32),
            jax.ShapeDtypeStruct((B, 1, L), jnp.float32),
        ),
        grid_spec=pltpu.PrefetchScalarGridSpec(
            num_scalar_prefetch=0,
            grid=(B, num_l_tiles),
            in_specs=[
                pl.BlockSpec((1, C, L_tile), lambda b, l: (b, 0, l)),
                pl.BlockSpec((C, n_e), lambda b, l: (0, 0)),
                pl.BlockSpec((n_e, 1), lambda b, l: (0, 0)),
            ],
            out_specs=[
                pl.BlockSpec((1, C, L_tile), lambda b, l: (b, 0, l)),
                pl.BlockSpec((1, 1, L_tile), lambda b, l: (b, 0, l)),
                pl.BlockSpec((1, 1, L_tile), lambda b, l: (b, 0, l)),
            ],
        ),
        compiler_params=pltpu.CompilerParams(
            dimension_semantics=("parallel", "parallel")),
    )(z, e_t, e_sq)

    inds = inds3d.reshape(B * L)                                   # b-major, l-minor
    # forward value of beta*mean((zq.detach()-z)^2) + mean((zq-z.detach())^2)
    loss = (1.0 + beta) * jnp.sum(sse_tok) / jnp.float32(B * L * C)
    # straight-through: forward value of z + (z_q - z).detach() is just z_q.
    return zq, loss, inds


if __name__ == "__main__":
    # Small shapes consistent with the module: B=2, e_dim=C=8, L=512, n_e=256.
    B, C, L = 2, 8, 512
    n_e, e_dim, beta = 256, 8, 0.1

    key = jax.random.PRNGKey(0)
    kz, ke = jax.random.split(key)
    z = jax.random.normal(kz, (B, C, L), dtype=jnp.float32)
    # nn.Embedding weight init: uniform(-1/n_e, 1/n_e), shape (n_e, e_dim)
    embedding = jax.random.uniform(
        ke, (n_e, e_dim), dtype=jnp.float32,
        minval=-1.0 / n_e, maxval=1.0 / n_e)

    # token_tile=256 exercises the (B, num_l_tiles) grid (2 x 2 tiles).
    z_q, loss, inds = vector_quantizer_forward(
        z, embedding, beta=beta, token_tile=256)
    jax.block_until_ready((z_q, loss, inds))

    # Sanity check against a pure-JAX reference of the same forward math.
    z_nlc = jnp.transpose(z, (0, 2, 1)).reshape(-1, e_dim)
    d_ref = (jnp.sum(z_nlc**2, 1, keepdims=True) + jnp.sum(embedding**2, 1)
             - 2.0 * z_nlc @ embedding.T)
    inds_ref = jnp.argmin(d_ref, axis=1)
    zq_ref = embedding[inds_ref]
    loss_ref = (1.0 + beta) * jnp.mean((zq_ref - z_nlc) ** 2)
    zq_ref_ncl = jnp.transpose(zq_ref.reshape(B, L, C), (0, 2, 1))

    assert jnp.array_equal(inds, inds_ref)
    assert jnp.allclose(z_q, zq_ref_ncl, atol=1e-6)
    assert jnp.allclose(loss, loss_ref, rtol=1e-5, atol=1e-6)

    print("KERNEL_OK")
</pallas_src>

<mosaic_0001>
module attributes {stable_mosaic.version = 11 : i64} {
  func.func @_vq_kernel(%arg0: i32, %arg1: i32, %arg2: memref<1x8x256xf32, #tpu.memory_space<vmem>>, %arg3: memref<8x256xf32, #tpu.memory_space<vmem>>, %arg4: memref<256x1xf32, #tpu.memory_space<vmem>>, %arg5: memref<1x8x256xf32, #tpu.memory_space<vmem>>, %arg6: memref<1x1x256xi32, #tpu.memory_space<vmem>>, %arg7: memref<1x1x256xf32, #tpu.memory_space<vmem>>) attributes {dimension_semantics = [#tpu.dimension_semantics<parallel>, #tpu.dimension_semantics<parallel>], iteration_bounds = array<i64: 2, 2>, scalar_prefetch = 0 : i64, scratch_operands = 0 : i64, tpu.core_type = #tpu.core_type<tc>, window_params = [{transform_indices = @transform_0, window_bounds = array<i64: 1, 8, 256>}, {pipeline_mode = #tpu.pipeline_mode<synchronous>, transform_indices = @transform_1, window_bounds = array<i64: 8, 256>}, {pipeline_mode = #tpu.pipeline_mode<synchronous>, transform_indices = @transform_2, window_bounds = array<i64: 256, 1>}, {transform_indices = @transform_3, window_bounds = array<i64: 1, 8, 256>}, {transform_indices = @transform_4, window_bounds = array<i64: 1, 1, 256>}, {transform_indices = @transform_5, window_bounds = array<i64: 1, 1, 256>}]} {
    %c0 = arith.constant 0 : index
    %c0_0 = arith.constant 0 : index
    %c0_1 = arith.constant 0 : index
    %0 = vector.load %arg2[%c0, %c0_0, %c0_1] : memref<1x8x256xf32, #tpu.memory_space<vmem>>, vector<1x8x256xf32>
    %1 = vector.shape_cast %0 : vector<1x8x256xf32> to vector<8x256xf32>
    %c0_2 = arith.constant 0 : index
    %c0_3 = arith.constant 0 : index
    %2 = vector.load %arg3[%c0_2, %c0_3] : memref<8x256xf32, #tpu.memory_space<vmem>>, vector<8x256xf32>
    %c0_4 = arith.constant 0 : index
    %c0_5 = arith.constant 0 : index
    %3 = vector.load %arg4[%c0_4, %c0_5] : memref<256x1xf32, #tpu.memory_space<vmem>>, vector<256x1xf32>
    %cst = arith.constant dense<0.000000e+00> : vector<256x256xf32>
    %4 = tpu.matmul %2, %1, %cst {dimension_numbers = #tpu.dot_dimension_numbers<[0], [0], [1], [1], [0, 1, 1, 1], [], []>} : vector<8x256xf32>, vector<8x256xf32>, vector<256x256xf32> -> vector<256x256xf32>
    %cst_6 = arith.constant 2.000000e+00 : f32
    %5 = vector.broadcast %cst_6 : f32 to vector<256x256xf32>
    %6 = arith.mulf %5, %4 : vector<256x256xf32>
    %7 = vector.broadcast %3 : vector<256x1xf32> to vector<256x256xf32>
    %8 = arith.subf %7, %6 : vector<256x256xf32>
    %9 = tpu.iota {dimensions = array<i32: 0>} : vector<256x256xi32>
    %cst_7 = arith.constant dense<0x7F800000> : vector<256xf32>
    %10 = vector.multi_reduction <minimumf>, %8, %cst_7 [0] : vector<256x256xf32> to vector<256xf32>
    %11 = vector.shape_cast %10 : vector<256xf32> to vector<1x256xf32>
    %12 = vector.broadcast %11 : vector<1x256xf32> to vector<256x256xf32>
    %13 = arith.cmpf oeq, %8, %12 : vector<256x256xf32>
    %c256_i32 = arith.constant 256 : i32
    %14 = vector.broadcast %c256_i32 : i32 to vector<256x256xi32>
    %15 = arith.select %13, %9, %14 : vector<256x256xi1>, vector<256x256xi32>
    %cst_8 = arith.constant dense<2147483647> : vector<256xi32>
    %16 = vector.multi_reduction <minsi>, %15, %cst_8 [0] : vector<256x256xi32> to vector<256xi32>
    %17 = vector.shape_cast %16 : vector<256xi32> to vector<1x256xi32>
    %18 = vector.broadcast %17 : vector<1x256xi32> to vector<256x256xi32>
    %19 = arith.cmpi eq, %9, %18 : vector<256x256xi32>
    %20 = arith.extui %19 : vector<256x256xi1> to vector<256x256xi32>
    %21 = arith.sitofp %20 : vector<256x256xi32> to vector<256x256xf32>
    %cst_9 = arith.constant dense<0.000000e+00> : vector<8x256xf32>
    %22 = tpu.matmul %2, %21, %cst_9 {dimension_numbers = #tpu.dot_dimension_numbers<[1], [0], [0], [1], [0, 0, 1, 1], [], []>} : vector<8x256xf32>, vector<256x256xf32>, vector<8x256xf32> -> vector<8x256xf32>
    %c0_10 = arith.constant 0 : index
    %c0_11 = arith.constant 0 : index
    %c0_12 = arith.constant 0 : index
    %23 = vector.load %arg5[%c0_10, %c0_11, %c0_12] : memref<1x8x256xf32, #tpu.memory_space<vmem>>, vector<1x8x256xf32>
    %24 = vector.shape_cast %23 : vector<1x8x256xf32> to vector<8x256xf32>
    %25 = vector.shape_cast %22 : vector<8x256xf32> to vector<1x8x256xf32>
    tpu.vector_store %arg5[%c0_10, %c0_11, %c0_12], %25 {strides = array<i32>} : memref<1x8x256xf32, #tpu.memory_space<vmem>>, vector<1x8x256xf32>,
    %c0_13 = arith.constant 0 : index
    %c0_14 = arith.constant 0 : index
    %c0_15 = arith.constant 0 : index
    %26 = vector.load %arg6[%c0_13, %c0_14, %c0_15] : memref<1x1x256xi32, #tpu.memory_space<vmem>>, vector<1x1x256xi32>
    %27 = vector.shape_cast %26 : vector<1x1x256xi32> to vector<1x256xi32>
    %28 = vector.shape_cast %17 : vector<1x256xi32> to vector<1x1x256xi32>
    tpu.vector_store %arg6[%c0_13, %c0_14, %c0_15], %28 {strides = array<i32>} : memref<1x1x256xi32, #tpu.memory_space<vmem>>, vector<1x1x256xi32>,
    %29 = arith.subf %22, %1 : vector<8x256xf32>
    %30 = arith.mulf %29, %29 : vector<8x256xf32>
    %cst_16 = arith.constant dense<0.000000e+00> : vector<256xf32>
    %31 = vector.multi_reduction <add>, %30, %cst_16 [0] : vector<8x256xf32> to vector<256xf32>
    %32 = vector.shape_cast %31 : vector<256xf32> to vector<1x256xf32>
    %c0_17 = arith.constant 0 : index
    %c0_18 = arith.constant 0 : index
    %c0_19 = arith.constant 0 : index
    %33 = vector.load %arg7[%c0_17, %c0_18, %c0_19] : memref<1x1x256xf32, #tpu.memory_space<vmem>>, vector<1x1x256xf32>
    %34 = vector.shape_cast %33 : vector<1x1x256xf32> to vector<1x256xf32>
    %35 = vector.shape_cast %32 : vector<1x256xf32> to vector<1x1x256xf32>
    tpu.vector_store %arg7[%c0_17, %c0_18, %c0_19], %35 {strides = array<i32>} : memref<1x1x256xf32, #tpu.memory_space<vmem>>, vector<1x1x256xf32>,
    return
  }
  func.func @transform_0(%arg0: i32, %arg1: i32) -> (i32, i32, i32) {
    %c0_i32 = arith.constant 0 : i32
    %c0_i32_0 = arith.constant 0 : i32
    return %arg0, %c0_i32, %arg1 : i32, i32, i32
  }
  func.func @transform_1(%arg0: i32, %arg1: i32) -> (i32, i32) {
    %c0_i32 = arith.constant 0 : i32
    %c0_i32_0 = arith.constant 0 : i32
    %c0_i32_1 = arith.constant 0 : i32
    return %c0_i32, %c0_i32_0 : i32, i32
  }
  func.func @transform_2(%arg0: i32, %arg1: i32) -> (i32, i32) {
    %c0_i32 = arith.constant 0 : i32
    %c0_i32_0 = arith.constant 0 : i32
    %c0_i32_1 = arith.constant 0 : i32
    return %c0_i32, %c0_i32_0 : i32, i32
  }
  func.func @transform_3(%arg0: i32, %arg1: i32) -> (i32, i32, i32) {
    %c0_i32 = arith.constant 0 : i32
    %c0_i32_0 = arith.constant 0 : i32
    return %arg0, %c0_i32, %arg1 : i32, i32, i32
  }
  func.func @transform_4(%arg0: i32, %arg1: i32) -> (i32, i32, i32) {
    %c0_i32 = arith.constant 0 : i32
    %c0_i32_0 = arith.constant 0 : i32
    return %arg0, %c0_i32, %arg1 : i32, i32, i32
  }
  func.func @transform_5(%arg0: i32, %arg1: i32) -> (i32, i32, i32) {
    %c0_i32 = arith.constant 0 : i32
    %c0_i32_0 = arith.constant 0 : i32
    return %arg0, %c0_i32, %arg1 : i32, i32, i32
  }
}

</mosaic_0001>

<llo_original>
// kernel: vector_quantizer_forward.1
$region0: #{vector_quantizer_forward.1}
  #allocation0 [shape = 'u32[]', space=smem, size = 0x4, offset = 0x4, fixed_abs, tag = 'smem constant byte address 0x4 - core index']
  #allocation1 [shape = 'u32[72,128]{1,0:T(1,128)}', space=vmem, size = 0x9000, scoped, tag = 'internal scratch']
  %s0 = inlined_call_operand.vmem [shape: f32[2,8,512], index: 0, kind: input, shape index: {}]
  %s1 = inlined_call_operand.vmem [shape: f32[8,256], index: 1, kind: input, shape index: {}]
  %s2 = inlined_call_operand.vmem [shape: f32[256,1], index: 2, kind: input, shape index: {}]
  %s3 = inlined_call_operand.hbm [shape: f32[2,8,512], index: 3, kind: output, shape index: {0}]
  %s4 = inlined_call_operand.hbm [shape: s32[2,1,512], index: 4, kind: output, shape index: {1}]
  %s5 = inlined_call_operand.vmem [shape: f32[2,1,512], index: 5, kind: output, shape index: {2}]
  %6 = xla_tuple %s3, %s4, %s5
  %s7 = sld [smem:[#allocation0]]
  $region61: #{vector_quantizer_forward.1} parent=0
    _
  %s9 = ssub.s32 1, %s7
  %s10 = scalar_select 0, %s9, %s7
  $region1: #{vector_quantizer_forward.1} parent=0
    #allocation2 [shape = 'u8[16384]{0}', space=vmem, size = 0x4000, scoped, tag = 'output window, operand 0']
    #allocation3 [shape = 's32[2]{0}', space=sflag, size = 0x8, scoped, tag = 'scoped memory for vector_quantizer_forward.1']
    #allocation4 [shape = 'u8[2048]{0}', space=vmem, size = 0x800, scoped, tag = 'output window, operand 1']
    #allocation5 [shape = 's32[2]{0}', space=sflag, size = 0x8, scoped, tag = 'scoped memory for vector_quantizer_forward.1']
    %11 = vsyncpa [#allocation3], 0
    %s12 = scalar_lea.sflag [#allocation3], 1
    %13 = vsyncpa %s12, 0
    %14 = vsyncpa [#allocation5], 0
    %s15 = scalar_lea.sflag [#allocation5], 1
    %16 = vsyncpa %s15, 0
    loop: start=0, step=1, limit=6
    $region2: #{vector_quantizer_forward.1} parent=1 // loop_pre_header
      _
    $region3: #{vector_quantizer_forward.1} parent=1 // loop_header
      %s18 = sphi 0, %s22
      %p19 = scmp.ge.s32.totalorder %s18, 6
      %s25 = sphi 0, %s37
      %s26 = sphi 0, %s33
      %s27 = sphi 0, %s25
      %s28 = sphi 0, %s26
      %s29 = sphi 0, %s27
      %s30 = sphi 0, %s28
      %s42 = sphi 0, %s44
      %s45 = sphi 0, %s42
      %s46 = sphi 0, %s45
      %s62 = sphi 0, %s46
      %s66 = sphi 0, %s66
      %s68 = sphi 0, %s66
      %s69 = sphi 0, %s68
      %s83 = sphi 0, %s69
      %s87 = sphi 0, %s87
      %s89 = sphi 0, %s87
      %s90 = sphi 0, %s89
      %s104 = sphi 0, %s90
      %s112 = sphi 0, %s114
      %s115 = sphi 0, %s112
      %s116 = sphi 0, %s115
      %s132 = sphi 0, %s116
      %s140 = sphi 0, %s142
      %s143 = sphi 0, %s140
      %s144 = sphi 0, %s143
      %s160 = sphi 0, %s144
      %s168 = sphi 0, %s170
      %s171 = sphi 0, %s168
      %s172 = sphi 0, %s171
      %s188 = sphi 0, %s172
    $region4: #{vector_quantizer_forward.1} parent=1 // loop_header_branch
      %21 = sbr.rel (%p19) target = $region8
    $region5: #{vector_quantizer_forward.1} parent=1 // loop_body
      %s23 = ssub.s32 %s18, 1
      %s24 = ssub.s32 %s18, 2
      %s31 = sadd.s32 1, %s26
      %p32 = scmp.ge.s32.totalorder %s31, 2
      %s33 = scalar_select %p32, 0, %s31
      %s34 = sadd.s32 1, %s25
      %s35 = scalar_select %p32, %s34, %s25
      %p36 = scmp.ge.s32.totalorder %s35, 2
      %s37 = scalar_select %p36, 0, %s35
      %s38 = ssub.s32 %s25, %s37
      %s39 = ssub.s32 %s26, %s33
      %s40 = sor.u32 %s38, %s39
      %p41 = scmp.eq.s32.totalorder %s40, 0
      %s43 = sadd.s32 %s42, 1
      %s44 = scalar_select %p41, %s42, %s43
      %p47 = pneg %p41
      %p48 = scmp.eq.s32.totalorder %s18, 3
      %p49 = por %p47, %p48
      %p50 = scmp.ne.s32.totalorder %s42, %s45
      %p51 = scmp.eq.s32.totalorder %s18, 0
      %p52 = por %p50, %p51
      %p53 = scmp.ne.s32.totalorder %s42, %s45
      %p54 = scmp.eq.s32.totalorder %s23, 3
      %p55 = por %p53, %p54
      %p56 = scmp.ne.s32.totalorder %s45, %s46
      %p57 = scmp.eq.s32.totalorder %s23, 0
      %p58 = por %p56, %p57
      %p59 = scmp.ne.s32.totalorder %s45, %s46
      %p60 = scmp.eq.s32.totalorder %s24, 3
      %p61 = por %p59, %p60
      %p63 = scmp.ne.s32.totalorder %s46, %s62
      %p64 = scmp.eq.s32.totalorder %s24, 0
      %p65 = por %p63, %p64
      %s67 = sadd.s32 %s66, 1
      %p70 = scmp.eq.s32.totalorder %s18, 3
      %p71 = scmp.ne.s32.totalorder %s66, %s68
      %p72 = scmp.eq.s32.totalorder %s18, 0
      %p73 = por %p71, %p72
      %p74 = scmp.ne.s32.totalorder %s66, %s68
      %p75 = scmp.eq.s32.totalorder %s23, 3
      %p76 = por %p74, %p75
      %p77 = scmp.ne.s32.totalorder %s68, %s69
      %p78 = scmp.eq.s32.totalorder %s23, 0
      %p79 = por %p77, %p78
      %p80 = scmp.ne.s32.totalorder %s68, %s69
      %p81 = scmp.eq.s32.totalorder %s24, 3
      %p82 = por %p80, %p81
      %p84 = scmp.ne.s32.totalorder %s69, %s83
      %p85 = scmp.eq.s32.totalorder %s24, 0
      %p86 = por %p84, %p85
      %s88 = sadd.s32 %s87, 1
      %p91 = scmp.eq.s32.totalorder %s18, 3
      %p92 = scmp.ne.s32.totalorder %s87, %s89
      %p93 = scmp.eq.s32.totalorder %s18, 0
      %p94 = por %p92, %p93
      %p95 = scmp.ne.s32.totalorder %s87, %s89
      %p96 = scmp.eq.s32.totalorder %s23, 3
      %p97 = por %p95, %p96
      %p98 = scmp.ne.s32.totalorder %s89, %s90
      %p99 = scmp.eq.s32.totalorder %s23, 0
      %p100 = por %p98, %p99
      %p101 = scmp.ne.s32.totalorder %s89, %s90
      %p102 = scmp.eq.s32.totalorder %s24, 3
      %p103 = por %p101, %p102
      %p105 = scmp.ne.s32.totalorder %s90, %s104
      %p106 = scmp.eq.s32.totalorder %s24, 0
      %p107 = por %p105, %p106
      %s108 = ssub.s32 %s25, %s37
      %s109 = ssub.s32 %s26, %s33
      %s110 = sor.u32 %s108, %s109
      %p111 = scmp.eq.s32.totalorder %s110, 0
      %s113 = sadd.s32 %s112, 1
      %s114 = scalar_select %p111, %s112, %s113
      %p117 = pneg %p111
      %p118 = scmp.eq.s32.totalorder %s18, 3
      %p119 = por %p117, %p118
      %p120 = scmp.ne.s32.totalorder %s112, %s115
      %p121 = scmp.eq.s32.totalorder %s18, 0
      %p122 = por %p120, %p121
      %p123 = scmp.ne.s32.totalorder %s112, %s115
      %p124 = scmp.eq.s32.totalorder %s23, 3
      %p125 = por %p123, %p124
      %p126 = scmp.ne.s32.totalorder %s115, %s116
      %p127 = scmp.eq.s32.totalorder %s23, 0
      %p128 = por %p126, %p127
      %p129 = scmp.ne.s32.totalorder %s115, %s116
      %p130 = scmp.eq.s32.totalorder %s24, 3
      %p131 = por %p129, %p130
      %p133 = scmp.ne.s32.totalorder %s116, %s132
      %p134 = scmp.eq.s32.totalorder %s24, 0
      %p135 = por %p133, %p134
      %s136 = ssub.s32 %s25, %s37
      %s137 = ssub.s32 %s26, %s33
      %s138 = sor.u32 %s136, %s137
      %p139 = scmp.eq.s32.totalorder %s138, 0
      %s141 = sadd.s32 %s140, 1
      %s142 = scalar_select %p139, %s140, %s141
      %p145 = pneg %p139
      %p146 = scmp.eq.s32.totalorder %s18, 3
      %p147 = por %p145, %p146
      %p148 = scmp.ne.s32.totalorder %s140, %s143
      %p149 = scmp.eq.s32.totalorder %s18, 0
      %p150 = por %p148, %p149
      %p151 = scmp.ne.s32.totalorder %s140, %s143
      %p152 = scmp.eq.s32.totalorder %s23, 3
      %p153 = por %p151, %p152
      %p154 = scmp.ne.s32.totalorder %s143, %s144
      %p155 = scmp.eq.s32.totalorder %s23, 0
      %p156 = por %p154, %p155
      %p157 = scmp.ne.s32.totalorder %s143, %s144
      %p158 = scmp.eq.s32.totalorder %s24, 3
      %p159 = por %p157, %p158
      %p161 = scmp.ne.s32.totalorder %s144, %s160
      %p162 = scmp.eq.s32.totalorder %s24, 0
      %p163 = por %p161, %p162
      %s164 = ssub.s32 %s25, %s37
      %s165 = ssub.s32 %s26, %s33
      %s166 = sor.u32 %s164, %s165
      %p167 = scmp.eq.s32.totalorder %s166, 0
      %s169 = sadd.s32 %s168, 1
      %s170 = scalar_select %p167, %s168, %s169
      %p173 = pneg %p167
      %p174 = scmp.eq.s32.totalorder %s18, 3
      %p175 = por %p173, %p174
      %p176 = scmp.ne.s32.totalorder %s168, %s171
      %p177 = scmp.eq.s32.totalorder %s18, 0
      %p178 = por %p176, %p177
      %p179 = scmp.ne.s32.totalorder %s168, %s171
      %p180 = scmp.eq.s32.totalorder %s23, 3
      %p181 = por %p179, %p180
      %p182 = scmp.ne.s32.totalorder %s171, %s172
      %p183 = scmp.eq.s32.totalorder %s23, 0
      %p184 = por %p182, %p183
      %p185 = scmp.ne.s32.totalorder %s171, %s172
      %p186 = scmp.eq.s32.totalorder %s24, 3
      %p187 = por %p185, %p186
      %p189 = scmp.ne.s32.totalorder %s172, %s188
      %p190 = scmp.eq.s32.totalorder %s24, 0
      %p191 = por %p189, %p190
      %p192 = scmp.le.s32.totalorder 1, %s18
      %p193 = scmp.lt.s32.totalorder %s18, 5
      %p194 = pnand %p192, %p193
      %p195 = pneg %p194
      // Predicated region
      $region9: #{vector_quantizer_forward.1} parent=5 // pred_check
        _
      $region10: #{vector_quantizer_forward.1} parent=5 // pred_check_branch
        %197 = sbr.rel (%p194) target = $region12
      $region11: #{vector_quantizer_forward.1} parent=5 // pred_region
        %s198 = ssub.s32 %s18, 1
        // Predicated region
        $region13: #{vector_quantizer_forward.1} parent=11 // pred_check
          %p199 = pneg %p79
        $region14: #{vector_quantizer_forward.1} parent=11 // pred_check_branch
          %201 = sbr.rel (%p199) target = $region16
        $region15: #{vector_quantizer_forward.1} parent=11 // pred_region
          _
        $region16: #{vector_quantizer_forward.1} parent=11 // pred_fallthru
          _
        // Predicated region
        $region17: #{vector_quantizer_forward.1} parent=11 // pred_check
          %p202 = pneg %p100
        $region18: #{vector_quantizer_forward.1} parent=11 // pred_check_branch
          %204 = sbr.rel (%p202) target = $region20
        $region19: #{vector_quantizer_forward.1} parent=11 // pred_region
          _
        $region20: #{vector_quantizer_forward.1} parent=11 // pred_fallthru
          _
      $region12: #{vector_quantizer_forward.1} parent=5 // pred_fallthru
        _
      %p205 = scmp.lt.s32.totalorder %s18, 4
      // Predicated region
      $region21: #{vector_quantizer_forward.1} parent=5 // pred_check
        %p206 = pneg %p205
      $region22: #{vector_quantizer_forward.1} parent=5 // pred_check_branch
        %208 = sbr.rel (%p206) target = $region24
      $region23: #{vector_quantizer_forward.1} parent=5 // pred_region
        // Predicated region
        $region25: #{vector_quantizer_forward.1} parent=23 // pred_check
          %p209 = pneg %p52
        $region26: #{vector_quantizer_forward.1} parent=23 // pred_check_branch
          %211 = sbr.rel (%p209) target = $region28
        $region27: #{vector_quantizer_forward.1} parent=23 // pred_region
          %s212 = smul.u32 2, %s26
          %p213 = scmp.lt.s32.totalorder %s25, 1
          %s214 = scalar_select %p213, %s25, 1
          %p215 = scmp.lt.s32.totalorder %s212, 3
          %s216 = scalar_select %p215, %s212, 3
          %s217 = smul.addr %s214, 4
          %s218 = sadd.s32 %s216, %s217
          %s219 = smul.addr %s218, 8
          %s220 = scalar_lea.vmem %s0, %s219
          %s221 = smul.u32 2, %s26
        $region28: #{vector_quantizer_forward.1} parent=23 // pred_fallthru
          _
      $region24: #{vector_quantizer_forward.1} parent=5 // pred_fallthru
        _
      %p222 = scmp.le.s32.totalorder 1, %s18
      %p223 = scmp.lt.s32.totalorder %s18, 5
      %p224 = pnand %p222, %p223
      %p225 = pneg %p224
      // Predicated region
      $region29: #{vector_quantizer_forward.1} parent=5 // pred_check
        _
      $region30: #{vector_quantizer_forward.1} parent=5 // pred_check_branch
        %227 = sbr.rel (%p224) target = $region32
      $region31: #{vector_quantizer_forward.1} parent=5 // pred_region
        %s228 = ssub.s32 %s18, 1
        %s229 = smul.u32 2, %s28
        %p230 = scmp.lt.s32.totalorder %s27, 1
        %s231 = scalar_select %p230, %s27, 1
        %p232 = scmp.lt.s32.totalorder %s229, 3
        %s233 = scalar_select %p232, %s229, 3
        %s234 = smul.addr %s231, 4
        %s235 = sadd.s32 %s233, %s234
        %s236 = smul.addr %s235, 8
        %s237 = scalar_lea.vmem %s0, %s236
        %p238 = pneg %p58
        %p239 = pneg %p55
        %p240 = pneg %p79
        %p241 = pneg %p76
        %p242 = pneg %p100
        %p243 = pneg %p97
        %p244 = pneg %p128
        %p245 = pneg %p125
        %s246 = sand.u32 %s115, 1
        %s247 = scalar_lea.sflag [#allocation3], %s246
        %s248 = sand.u32 %s115, 1
        %s249 = smul.addr %s248, 16
        %s250 = scalar_lea.vmem [#allocation2], %s249
        %p251 = pneg %p156
        %p252 = pneg %p153
        %s253 = sand.u32 %s143, 1
        %s254 = scalar_lea.sflag [#allocation5], %s253
        %s255 = sand.u32 %s143, 1
        %s256 = smul.addr %s255, 2
        %s257 = scalar_lea.vmem [#allocation4], %s256
        %p258 = pneg %p184
        %p259 = pneg %p181
        %s260 = smul.u32 2, %s28
        %p261 = scmp.lt.s32.totalorder %s27, 1
        %s262 = scalar_select %p261, %s27, 1
        %p263 = scmp.lt.s32.totalorder %s260, 3
        %s264 = scalar_select %p263, %s260, 3
        %s265 = smul.addr %s262, 4
        %s266 = sadd.s32 %s264, %s265
        %s267 = scalar_lea.vmem %s5, %s266
        %s268 = smul.u32 2, %s28
        %p269 = scmp.lt.s32.totalorder %s27, 1
        %s270 = scalar_select %p269, %s27, 1
        %p271 = scmp.lt.s32.totalorder %s268, 3
        %s272 = scalar_select %p271, %s268, 3
        %s273 = smul.addr %s270, 4
        %s274 = sadd.s32 %s272, %s273
        %s275 = smul.addr %s274, 8
        %s276 = scalar_lea.vmem %s0, %s275
        %s277 = smul.u32 2, %s28
        %s278 = smul.u32 2, %s28
        %s279 = smul.u32 2, %s28
        %s280 = smul.u32 2, %s28
        %p281 = scmp.lt.s32.totalorder %s27, 1
        %s282 = scalar_select %p281, %s27, 1
        %p283 = scmp.lt.s32.totalorder %s280, 3
        %s284 = scalar_select %p283, %s280, 3
        %s285 = smul.addr %s282, 4
        %s286 = sadd.s32 %s284, %s285
        %s287 = scalar_lea.vmem %s5, %s286
        %s288 = smul.u32 2, %s28
        %v289 = vld [vmem:[%s276] sm:$0xff]
        %v290 = vld [vmem:[%s276 + $0x8] sm:$0xff]
        %v291 = vld [vmem:[%s1] sm:$0xff]
        %v292 = vld [vmem:[%s1 + $0x8] sm:$0xff]
        %v293 = vld [vmem:[%s2] sm:$0xff]
        %v294 = vld [vmem:[%s2 + $0x8] sm:$0xff]
        %v295 = vld [vmem:[%s2 + $0x10] sm:$0xff]
        %v296 = vld [vmem:[%s2 + $0x18] sm:$0xff]
        %v297 = vld [vmem:[%s2 + $0x20] sm:$0xff]
        %v298 = vld [vmem:[%s2 + $0x28] sm:$0xff]
        %v299 = vld [vmem:[%s2 + $0x30] sm:$0xff]
        %v300 = vld [vmem:[%s2 + $0x38] sm:$0xff]
        %v301 = vld [vmem:[%s2 + $0x40] sm:$0xff]
        %v302 = vld [vmem:[%s2 + $0x48] sm:$0xff]
        %v303 = vld [vmem:[%s2 + $0x50] sm:$0xff]
        %v304 = vld [vmem:[%s2 + $0x58] sm:$0xff]
        %v305 = vld [vmem:[%s2 + $0x60] sm:$0xff]
        %v306 = vld [vmem:[%s2 + $0x68] sm:$0xff]
        %v307 = vld [vmem:[%s2 + $0x70] sm:$0xff]
        %v308 = vld [vmem:[%s2 + $0x78] sm:$0xff]
        %v309 = vld [vmem:[%s2 + $0x80] sm:$0xff]
        %v310 = vld [vmem:[%s2 + $0x88] sm:$0xff]
        %v311 = vld [vmem:[%s2 + $0x90] sm:$0xff]
        %v312 = vld [vmem:[%s2 + $0x98] sm:$0xff]
        %v313 = vld [vmem:[%s2 + $0xa0] sm:$0xff]
        %v314 = vld [vmem:[%s2 + $0xa8] sm:$0xff]
        %v315 = vld [vmem:[%s2 + $0xb0] sm:$0xff]
        %v316 = vld [vmem:[%s2 + $0xb8] sm:$0xff]
        %v317 = vld [vmem:[%s2 + $0xc0] sm:$0xff]
        %v318 = vld [vmem:[%s2 + $0xc8] sm:$0xff]
        %v319 = vld [vmem:[%s2 + $0xd0] sm:$0xff]
        %v320 = vld [vmem:[%s2 + $0xd8] sm:$0xff]
        %v321 = vld [vmem:[%s2 + $0xe0] sm:$0xff]
        %v322 = vld [vmem:[%s2 + $0xe8] sm:$0xff]
        %v323 = vld [vmem:[%s2 + $0xf0] sm:$0xff]
        %v324 = vld [vmem:[%s2 + $0xf8] sm:$0xff]
        %325 = vxpose.xlu0.b32.start [1/16] %v291, 128
        %326 = vxpose.xlu0.b32.cont [2/16] 0.0, 128
        %327 = vxpose.xlu0.b32.cont [3/16] 0.0, 128
        %328 = vxpose.xlu0.b32.cont [4/16] 0.0, 128
        %329 = vxpose.xlu0.b32.cont [5/16] 0.0, 128
        %330 = vxpose.xlu0.b32.cont [6/16] 0.0, 128
        %331 = vxpose.xlu0.b32.cont [7/16] 0.0, 128
        %332 = vxpose.xlu0.b32.cont [8/16] 0.0, 128
        %333 = vxpose.xlu0.b32.cont [9/16] 0.0, 128
        %334 = vxpose.xlu0.b32.cont [10/16] 0.0, 128
        %335 = vxpose.xlu0.b32.cont [11/16] 0.0, 128
        %336 = vxpose.xlu0.b32.cont [12/16] 0.0, 128
        %337 = vxpose.xlu0.b32.cont [13/16] 0.0, 128
        %338 = vxpose.xlu0.b32.cont [14/16] 0.0, 128
        %339 = vxpose.xlu0.b32.cont [15/16] 0.0, 128
        %340 = vxpose.xlu0.b32.end [16/16] 0.0, 128
        %v341 = vpop.trf.xlu0
        %v342 = vpop.trf.xlu0
        %v343 = vpop.trf.xlu0
        %v344 = vpop.trf.xlu0
        %v345 = vpop.trf.xlu0
        %v346 = vpop.trf.xlu0
        %v347 = vpop.trf.xlu0
        %v348 = vpop.trf.xlu0
        %v349 = vpop.trf.xlu0
        %v350 = vpop.trf.xlu0
        %v351 = vpop.trf.xlu0
        %v352 = vpop.trf.xlu0
        %v353 = vpop.trf.xlu0
        %v354 = vpop.trf.xlu0
        %v355 = vpop.trf.xlu0
        %v356 = vpop.trf.xlu0
        %357 = vxpose.xlu0.b32.start [1/16] %v292, 128
        %358 = vxpose.xlu0.b32.cont [2/16] 0.0, 128
        %359 = vxpose.xlu0.b32.cont [3/16] 0.0, 128
        %360 = vxpose.xlu0.b32.cont [4/16] 0.0, 128
        %361 = vxpose.xlu0.b32.cont [5/16] 0.0, 128
        %362 = vxpose.xlu0.b32.cont [6/16] 0.0, 128
        %363 = vxpose.xlu0.b32.cont [7/16] 0.0, 128
        %364 = vxpose.xlu0.b32.cont [8/16] 0.0, 128
        %365 = vxpose.xlu0.b32.cont [9/16] 0.0, 128
        %366 = vxpose.xlu0.b32.cont [10/16] 0.0, 128
        %367 = vxpose.xlu0.b32.cont [11/16] 0.0, 128
        %368 = vxpose.xlu0.b32.cont [12/16] 0.0, 128
        %369 = vxpose.xlu0.b32.cont [13/16] 0.0, 128
        %370 = vxpose.xlu0.b32.cont [14/16] 0.0, 128
        %371 = vxpose.xlu0.b32.cont [15/16] 0.0, 128
        %372 = vxpose.xlu0.b32.end [16/16] 0.0, 128
        %v373 = vpop.trf.xlu0
        %v374 = vpop.trf.xlu0
        %v375 = vpop.trf.xlu0
        %v376 = vpop.trf.xlu0
        %v377 = vpop.trf.xlu0
        %v378 = vpop.trf.xlu0
        %v379 = vpop.trf.xlu0
        %v380 = vpop.trf.xlu0
        %v381 = vpop.trf.xlu0
        %v382 = vpop.trf.xlu0
        %v383 = vpop.trf.xlu0
        %v384 = vpop.trf.xlu0
        %v385 = vpop.trf.xlu0
        %v386 = vpop.trf.xlu0
        %v387 = vpop.trf.xlu0
        %v388 = vpop.trf.xlu0
        %vm389 = vcmask 64512
        %v391 = vsel %vm389, %v341, 0
        %v394 = vsel %vm389, %v342, 0
        %v397 = vsel %vm389, %v343, 0
        %v400 = vsel %vm389, %v344, 0
        %v403 = vsel %vm389, %v345, 0
        %v406 = vsel %vm389, %v346, 0
        %v409 = vsel %vm389, %v347, 0
        %v412 = vsel %vm389, %v348, 0
        %v415 = vsel %vm389, %v349, 0
        %v418 = vsel %vm389, %v350, 0
        %v421 = vsel %vm389, %v351, 0
        %v424 = vsel %vm389, %v352, 0
        %v427 = vsel %vm389, %v353, 0
        %v430 = vsel %vm389, %v354, 0
        %v433 = vsel %vm389, %v355, 0
        %v436 = vsel %vm389, %v356, 0
        %v439 = vsel %vm389, %v373, 0
        %v442 = vsel %vm389, %v374, 0
        %v445 = vsel %vm389, %v375, 0
        %v448 = vsel %vm389, %v376, 0
        %v451 = vsel %vm389, %v377, 0
        %v454 = vsel %vm389, %v378, 0
        %v457 = vsel %vm389, %v379, 0
        %v460 = vsel %vm389, %v380, 0
        %v463 = vsel %vm389, %v381, 0
        %v466 = vsel %vm389, %v382, 0
        %v469 = vsel %vm389, %v383, 0
        %v472 = vsel %vm389, %v384, 0
        %v475 = vsel %vm389, %v385, 0
        %v478 = vsel %vm389, %v386, 0
        %v481 = vsel %vm389, %v387, 0
        %v484 = vsel %vm389, %v388, 0
        %486 = vmatpush.msra.mxu0 0.0
        %487 = vmatpush.msra.mxu0 0.0
        %488 = vmatpush.msra.mxu0 0.0
        %489 = vmatpush.msra.mxu0 0.0
        %490 = vmatpush.msra.mxu0 0.0
        %491 = vmatpush.msra.mxu0 0.0
        %492 = vmatpush.msra.mxu0 0.0
        %493 = vmatpush.msra.mxu0 0.0
        %494 = vmatpush.msra.mxu0 0.0
        %495 = vmatpush.msra.mxu0 0.0
        %496 = vmatpush.msra.mxu0 0.0
        %497 = vmatpush.msra.mxu0 0.0
        %498 = vmatpush.msra.mxu0 0.0
        %499 = vmatpush.msra.mxu0 0.0
        %500 = vmatpush.msra.mxu0 0.0
        %501 = vmatpush.msra.mxu0 %v289
        %502 = vmatmul.f32.gmra.mxu0 %v391
        %v503 = vpop.f32.mrf.mxu0
        %v504 = vadd.f32 0.0, %v503
        %505 = vmatmul.f32.gmra.mxu0 %v394
        %v506 = vpop.f32.mrf.mxu0
        %v507 = vadd.f32 0.0, %v506
        %508 = vmatmul.f32.gmra.mxu0 %v397
        %v509 = vpop.f32.mrf.mxu0
        %v510 = vadd.f32 0.0, %v509
        %511 = vmatmul.f32.gmra.mxu0 %v400
        %v512 = vpop.f32.mrf.mxu0
        %v513 = vadd.f32 0.0, %v512
        %514 = vmatmul.f32.gmra.mxu0 %v403
        %v515 = vpop.f32.mrf.mxu0
        %v516 = vadd.f32 0.0, %v515
        %517 = vmatmul.f32.gmra.mxu0 %v406
        %v518 = vpop.f32.mrf.mxu0
        %v519 = vadd.f32 0.0, %v518
        %520 = vmatmul.f32.gmra.mxu0 %v409
        %v521 = vpop.f32.mrf.mxu0
        %v522 = vadd.f32 0.0, %v521
        %523 = vmatmul.f32.gmra.mxu0 %v412
        %v524 = vpop.f32.mrf.mxu0
        %v525 = vadd.f32 0.0, %v524
        %526 = vmatmul.f32.gmra.mxu0 %v415
        %v527 = vpop.f32.mrf.mxu0
        %v528 = vadd.f32 0.0, %v527
        %529 = vmatmul.f32.gmra.mxu0 %v418
        %v530 = vpop.f32.mrf.mxu0
        %v531 = vadd.f32 0.0, %v530
        %532 = vmatmul.f32.gmra.mxu0 %v421
        %v533 = vpop.f32.mrf.mxu0
        %v534 = vadd.f32 0.0, %v533
        %535 = vmatmul.f32.gmra.mxu0 %v424
        %v536 = vpop.f32.mrf.mxu0
        %v537 = vadd.f32 0.0, %v536
        %538 = vmatmul.f32.gmra.mxu0 %v427
        %v539 = vpop.f32.mrf.mxu0
        %v540 = vadd.f32 0.0, %v539
        %541 = vmatmul.f32.gmra.mxu0 %v430
        %v542 = vpop.f32.mrf.mxu0
        %v543 = vadd.f32 0.0, %v542
        %544 = vmatmul.f32.gmra.mxu0 %v433
        %v545 = vpop.f32.mrf.mxu0
        %v546 = vadd.f32 0.0, %v545
        %547 = vmatmul.f32.gmra.mxu0 %v436
        %v548 = vpop.f32.mrf.mxu0
        %v549 = vadd.f32 0.0, %v548
        %550 = vmatmul.f32.gmra.mxu0 %v439
        %v551 = vpop.f32.mrf.mxu0
        %v552 = vadd.f32 0.0, %v551
        %553 = vmatmul.f32.gmra.mxu0 %v442
        %v554 = vpop.f32.mrf.mxu0
        %v555 = vadd.f32 0.0, %v554
        %556 = vmatmul.f32.gmra.mxu0 %v445
        %v557 = vpop.f32.mrf.mxu0
        %v558 = vadd.f32 0.0, %v557
        %559 = vmatmul.f32.gmra.mxu0 %v448
        %v560 = vpop.f32.mrf.mxu0
        %v561 = vadd.f32 0.0, %v560
        %562 = vmatmul.f32.gmra.mxu0 %v451
        %v563 = vpop.f32.mrf.mxu0
        %v564 = vadd.f32 0.0, %v563
        %565 = vmatmul.f32.gmra.mxu0 %v454
        %v566 = vpop.f32.mrf.mxu0
        %v567 = vadd.f32 0.0, %v566
        %568 = vmatmul.f32.gmra.mxu0 %v457
        %v569 = vpop.f32.mrf.mxu0
        %v570 = vadd.f32 0.0, %v569
        %571 = vmatmul.f32.gmra.mxu0 %v460
        %v572 = vpop.f32.mrf.mxu0
        %v573 = vadd.f32 0.0, %v572
        %574 = vmatmul.f32.gmra.mxu0 %v463
        %v575 = vpop.f32.mrf.mxu0
        %v576 = vadd.f32 0.0, %v575
        %577 = vmatmul.f32.gmra.mxu0 %v466
        %v578 = vpop.f32.mrf.mxu0
        %v579 = vadd.f32 0.0, %v578
        %580 = vmatmul.f32.gmra.mxu0 %v469
        %v581 = vpop.f32.mrf.mxu0
        %v582 = vadd.f32 0.0, %v581
        %583 = vmatmul.f32.gmra.mxu0 %v472
        %v584 = vpop.f32.mrf.mxu0
        %v585 = vadd.f32 0.0, %v584
        %586 = vmatmul.f32.gmra.mxu0 %v475
        %v587 = vpop.f32.mrf.mxu0
        %v588 = vadd.f32 0.0, %v587
        %589 = vmatmul.f32.gmra.mxu0 %v478
        %v590 = vpop.f32.mrf.mxu0
        %v591 = vadd.f32 0.0, %v590
        %592 = vmatmul.f32.gmra.mxu0 %v481
        %v593 = vpop.f32.mrf.mxu0
        %v594 = vadd.f32 0.0, %v593
        %595 = vmatmul.f32.gmra.mxu0 %v484
        %v596 = vpop.f32.mrf.mxu0
        %v597 = vadd.f32 0.0, %v596
        %598 = vdwg.mxu0
        %599 = vmatpush.msra.mxu0 0.0
        %600 = vmatpush.msra.mxu0 0.0
        %601 = vmatpush.msra.mxu0 0.0
        %602 = vmatpush.msra.mxu0 0.0
        %603 = vmatpush.msra.mxu0 0.0
        %604 = vmatpush.msra.mxu0 0.0
        %605 = vmatpush.msra.mxu0 0.0
        %606 = vmatpush.msra.mxu0 0.0
        %607 = vmatpush.msra.mxu0 0.0
        %608 = vmatpush.msra.mxu0 0.0
        %609 = vmatpush.msra.mxu0 0.0
        %610 = vmatpush.msra.mxu0 0.0
        %611 = vmatpush.msra.mxu0 0.0
        %612 = vmatpush.msra.mxu0 0.0
        %613 = vmatpush.msra.mxu0 0.0
        %614 = vmatpush.msra.mxu0 %v290
        %615 = vmatmul.f32.gmra.mxu0 %v391
        %v616 = vpop.f32.mrf.mxu0
        %v617 = vadd.f32 0.0, %v616
        %618 = vmatmul.f32.gmra.mxu0 %v394
        %v619 = vpop.f32.mrf.mxu0
        %v620 = vadd.f32 0.0, %v619
        %621 = vmatmul.f32.gmra.mxu0 %v397
        %v622 = vpop.f32.mrf.mxu0
        %v623 = vadd.f32 0.0, %v622
        %624 = vmatmul.f32.gmra.mxu0 %v400
        %v625 = vpop.f32.mrf.mxu0
        %v626 = vadd.f32 0.0, %v625
        %627 = vmatmul.f32.gmra.mxu0 %v403
        %v628 = vpop.f32.mrf.mxu0
        %v629 = vadd.f32 0.0, %v628
        %630 = vmatmul.f32.gmra.mxu0 %v406
        %v631 = vpop.f32.mrf.mxu0
        %v632 = vadd.f32 0.0, %v631
        %633 = vmatmul.f32.gmra.mxu0 %v409
        %v634 = vpop.f32.mrf.mxu0
        %v635 = vadd.f32 0.0, %v634
        %636 = vmatmul.f32.gmra.mxu0 %v412
        %v637 = vpop.f32.mrf.mxu0
        %v638 = vadd.f32 0.0, %v637
        %639 = vmatmul.f32.gmra.mxu0 %v415
        %v640 = vpop.f32.mrf.mxu0
        %v641 = vadd.f32 0.0, %v640
        %642 = vmatmul.f32.gmra.mxu0 %v418
        %v643 = vpop.f32.mrf.mxu0
        %v644 = vadd.f32 0.0, %v643
        %645 = vmatmul.f32.gmra.mxu0 %v421
        %v646 = vpop.f32.mrf.mxu0
        %v647 = vadd.f32 0.0, %v646
        %648 = vmatmul.f32.gmra.mxu0 %v424
        %v649 = vpop.f32.mrf.mxu0
        %v650 = vadd.f32 0.0, %v649
        %651 = vmatmul.f32.gmra.mxu0 %v427
        %v652 = vpop.f32.mrf.mxu0
        %v653 = vadd.f32 0.0, %v652
        %654 = vmatmul.f32.gmra.mxu0 %v430
        %v655 = vpop.f32.mrf.mxu0
        %v656 = vadd.f32 0.0, %v655
        %657 = vmatmul.f32.gmra.mxu0 %v433
        %v658 = vpop.f32.mrf.mxu0
        %v659 = vadd.f32 0.0, %v658
        %660 = vmatmul.f32.gmra.mxu0 %v436
        %v661 = vpop.f32.mrf.mxu0
        %v662 = vadd.f32 0.0, %v661
        %663 = vmatmul.f32.gmra.mxu0 %v439
        %v664 = vpop.f32.mrf.mxu0
        %v665 = vadd.f32 0.0, %v664
        %666 = vmatmul.f32.gmra.mxu0 %v442
        %v667 = vpop.f32.mrf.mxu0
        %v668 = vadd.f32 0.0, %v667
        %669 = vmatmul.f32.gmra.mxu0 %v445
        %v670 = vpop.f32.mrf.mxu0
        %v671 = vadd.f32 0.0, %v670
        %672 = vmatmul.f32.gmra.mxu0 %v448
        %v673 = vpop.f32.mrf.mxu0
        %v674 = vadd.f32 0.0, %v673
        %675 = vmatmul.f32.gmra.mxu0 %v451
        %v676 = vpop.f32.mrf.mxu0
        %v677 = vadd.f32 0.0, %v676
        %678 = vmatmul.f32.gmra.mxu0 %v454
        %v679 = vpop.f32.mrf.mxu0
        %v680 = vadd.f32 0.0, %v679
        %681 = vmatmul.f32.gmra.mxu0 %v457
        %v682 = vpop.f32.mrf.mxu0
        %v683 = vadd.f32 0.0, %v682
        %684 = vmatmul.f32.gmra.mxu0 %v460
        %v685 = vpop.f32.mrf.mxu0
        %v686 = vadd.f32 0.0, %v685
        %687 = vmatmul.f32.gmra.mxu0 %v463
        %v688 = vpop.f32.mrf.mxu0
        %v689 = vadd.f32 0.0, %v688
        %690 = vmatmul.f32.gmra.mxu0 %v466
        %v691 = vpop.f32.mrf.mxu0
        %v692 = vadd.f32 0.0, %v691
        %693 = vmatmul.f32.gmra.mxu0 %v469
        %v694 = vpop.f32.mrf.mxu0
        %v695 = vadd.f32 0.0, %v694
        %696 = vmatmul.f32.gmra.mxu0 %v472
        %v697 = vpop.f32.mrf.mxu0
        %v698 = vadd.f32 0.0, %v697
        %699 = vmatmul.f32.gmra.mxu0 %v475
        %v700 = vpop.f32.mrf.mxu0
        %v701 = vadd.f32 0.0, %v700
        %702 = vmatmul.f32.gmra.mxu0 %v478
        %v703 = vpop.f32.mrf.mxu0
        %v704 = vadd.f32 0.0, %v703
        %705 = vmatmul.f32.gmra.mxu0 %v481
        %v706 = vpop.f32.mrf.mxu0
        %v707 = vadd.f32 0.0, %v706
        %708 = vmatmul.f32.gmra.mxu0 %v484
        %v709 = vpop.f32.mrf.mxu0
        %v710 = vadd.f32 0.0, %v709
        %711 = vdwg.mxu0
        %v712 = vmul.f32 %v504, 2.0
        %v713 = vmul.f32 %v617, 2.0
        %v714 = vmul.f32 %v507, 2.0
        %v715 = vmul.f32 %v620, 2.0
        %v716 = vmul.f32 %v510, 2.0
        %v717 = vmul.f32 %v623, 2.0
        %v718 = vmul.f32 %v513, 2.0
        %v719 = vmul.f32 %v626, 2.0
        %v720 = vmul.f32 %v516, 2.0
        %v721 = vmul.f32 %v629, 2.0
        %v722 = vmul.f32 %v519, 2.0
        %v723 = vmul.f32 %v632, 2.0
        %v724 = vmul.f32 %v522, 2.0
        %v725 = vmul.f32 %v635, 2.0
        %v726 = vmul.f32 %v525, 2.0
        %v727 = vmul.f32 %v638, 2.0
        %v728 = vmul.f32 %v528, 2.0
        %v729 = vmul.f32 %v641, 2.0
        %v730 = vmul.f32 %v531, 2.0
        %v731 = vmul.f32 %v644, 2.0
        %v732 = vmul.f32 %v534, 2.0
        %v733 = vmul.f32 %v647, 2.0
        %v734 = vmul.f32 %v537, 2.0
        %v735 = vmul.f32 %v650, 2.0
        %v736 = vmul.f32 %v540, 2.0
        %v737 = vmul.f32 %v653, 2.0
        %v738 = vmul.f32 %v543, 2.0
        %v739 = vmul.f32 %v656, 2.0
        %v740 = vmul.f32 %v546, 2.0
        %v741 = vmul.f32 %v659, 2.0
        %v742 = vmul.f32 %v549, 2.0
        %v743 = vmul.f32 %v662, 2.0
        %v744 = vmul.f32 %v552, 2.0
        %v745 = vmul.f32 %v665, 2.0
        %v746 = vmul.f32 %v555, 2.0
        %v747 = vmul.f32 %v668, 2.0
        %v748 = vmul.f32 %v558, 2.0
        %v749 = vmul.f32 %v671, 2.0
        %v750 = vmul.f32 %v561, 2.0
        %v751 = vmul.f32 %v674, 2.0
        %v752 = vmul.f32 %v564, 2.0
        %v753 = vmul.f32 %v677, 2.0
        %v754 = vmul.f32 %v567, 2.0
        %v755 = vmul.f32 %v680, 2.0
        %v756 = vmul.f32 %v570, 2.0
        %v757 = vmul.f32 %v683, 2.0
        %v758 = vmul.f32 %v573, 2.0
        %v759 = vmul.f32 %v686, 2.0
        %v760 = vmul.f32 %v576, 2.0
        %v761 = vmul.f32 %v689, 2.0
        %v762 = vmul.f32 %v579, 2.0
        %v763 = vmul.f32 %v692, 2.0
        %v764 = vmul.f32 %v582, 2.0
        %v765 = vmul.f32 %v695, 2.0
        %v766 = vmul.f32 %v585, 2.0
        %v767 = vmul.f32 %v698, 2.0
        %v768 = vmul.f32 %v588, 2.0
        %v769 = vmul.f32 %v701, 2.0
        %v770 = vmul.f32 %v591, 2.0
        %v771 = vmul.f32 %v704, 2.0
        %v772 = vmul.f32 %v594, 2.0
        %v773 = vmul.f32 %v707, 2.0
        %v774 = vmul.f32 %v597, 2.0
        %v775 = vmul.f32 %v710, 2.0
        %777 = vset.pattern.permute.xlu0 0
        %778 = vperm.xlu0 %777, %v293
        %v779 = vpop.permute.xlu0 %778
        %782 = vset.pattern.permute.xlu0 0
        %783 = vperm.xlu0 %782, %v294
        %v784 = vpop.permute.xlu0 %783
        %787 = vset.pattern.permute.xlu0 0
        %788 = vperm.xlu0 %787, %v295
        %v789 = vpop.permute.xlu0 %788
        %792 = vset.pattern.permute.xlu0 0
        %793 = vperm.xlu0 %792, %v296
        %v794 = vpop.permute.xlu0 %793
        %797 = vset.pattern.permute.xlu0 0
        %798 = vperm.xlu0 %797, %v297
        %v799 = vpop.permute.xlu0 %798
        %802 = vset.pattern.permute.xlu0 0
        %803 = vperm.xlu0 %802, %v298
        %v804 = vpop.permute.xlu0 %803
        %807 = vset.pattern.permute.xlu0 0
        %808 = vperm.xlu0 %807, %v299
        %v809 = vpop.permute.xlu0 %808
        %812 = vset.pattern.permute.xlu0 0
        %813 = vperm.xlu0 %812, %v300
        %v814 = vpop.permute.xlu0 %813
        %817 = vset.pattern.permute.xlu0 0
        %818 = vperm.xlu0 %817, %v301
        %v819 = vpop.permute.xlu0 %818
        %822 = vset.pattern.permute.xlu0 0
        %823 = vperm.xlu0 %822, %v302
        %v824 = vpop.permute.xlu0 %823
        %827 = vset.pattern.permute.xlu0 0
        %828 = vperm.xlu0 %827, %v303
        %v829 = vpop.permute.xlu0 %828
        %832 = vset.pattern.permute.xlu0 0
        %833 = vperm.xlu0 %832, %v304
        %v834 = vpop.permute.xlu0 %833
        %837 = vset.pattern.permute.xlu0 0
        %838 = vperm.xlu0 %837, %v305
        %v839 = vpop.permute.xlu0 %838
        %842 = vset.pattern.permute.xlu0 0
        %843 = vperm.xlu0 %842, %v306
        %v844 = vpop.permute.xlu0 %843
        %847 = vset.pattern.permute.xlu0 0
        %848 = vperm.xlu0 %847, %v307
        %v849 = vpop.permute.xlu0 %848
        %852 = vset.pattern.permute.xlu0 0
        %853 = vperm.xlu0 %852, %v308
        %v854 = vpop.permute.xlu0 %853
        %857 = vset.pattern.permute.xlu0 0
        %858 = vperm.xlu0 %857, %v309
        %v859 = vpop.permute.xlu0 %858
        %862 = vset.pattern.permute.xlu0 0
        %863 = vperm.xlu0 %862, %v310
        %v864 = vpop.permute.xlu0 %863
        %867 = vset.pattern.permute.xlu0 0
        %868 = vperm.xlu0 %867, %v311
        %v869 = vpop.permute.xlu0 %868
        %872 = vset.pattern.permute.xlu0 0
        %873 = vperm.xlu0 %872, %v312
        %v874 = vpop.permute.xlu0 %873
        %877 = vset.pattern.permute.xlu0 0
        %878 = vperm.xlu0 %877, %v313
        %v879 = vpop.permute.xlu0 %878
        %882 = vset.pattern.permute.xlu0 0
        %883 = vperm.xlu0 %882, %v314
        %v884 = vpop.permute.xlu0 %883
        %887 = vset.pattern.permute.xlu0 0
        %888 = vperm.xlu0 %887, %v315
        %v889 = vpop.permute.xlu0 %888
        %892 = vset.pattern.permute.xlu0 0
        %893 = vperm.xlu0 %892, %v316
        %v894 = vpop.permute.xlu0 %893
        %897 = vset.pattern.permute.xlu0 0
        %898 = vperm.xlu0 %897, %v317
        %v899 = vpop.permute.xlu0 %898
        %902 = vset.pattern.permute.xlu0 0
        %903 = vperm.xlu0 %902, %v318
        %v904 = vpop.permute.xlu0 %903
        %907 = vset.pattern.permute.xlu0 0
        %908 = vperm.xlu0 %907, %v319
        %v909 = vpop.permute.xlu0 %908
        %912 = vset.pattern.permute.xlu0 0
        %913 = vperm.xlu0 %912, %v320
        %v914 = vpop.permute.xlu0 %913
        %917 = vset.pattern.permute.xlu0 0
        %918 = vperm.xlu0 %917, %v321
        %v919 = vpop.permute.xlu0 %918
        %922 = vset.pattern.permute.xlu0 0
        %923 = vperm.xlu0 %922, %v322
        %v924 = vpop.permute.xlu0 %923
        %927 = vset.pattern.permute.xlu0 0
        %928 = vperm.xlu0 %927, %v323
        %v929 = vpop.permute.xlu0 %928
        %932 = vset.pattern.permute.xlu0 0
        %933 = vperm.xlu0 %932, %v324
        %v934 = vpop.permute.xlu0 %933
        %v936 = vsub.f32 %v779, %v712
        %v937 = vsub.f32 %v779, %v713
        %v938 = vsub.f32 %v784, %v714
        %v939 = vsub.f32 %v784, %v715
        %v940 = vsub.f32 %v789, %v716
        %v941 = vsub.f32 %v789, %v717
        %v942 = vsub.f32 %v794, %v718
        %v943 = vsub.f32 %v794, %v719
        %v944 = vsub.f32 %v799, %v720
        %v945 = vsub.f32 %v799, %v721
        %v946 = vsub.f32 %v804, %v722
        %v947 = vsub.f32 %v804, %v723
        %v948 = vsub.f32 %v809, %v724
        %v949 = vsub.f32 %v809, %v725
        %v950 = vsub.f32 %v814, %v726
        %v951 = vsub.f32 %v814, %v727
        %v952 = vsub.f32 %v819, %v728
        %v953 = vsub.f32 %v819, %v729
        %v954 = vsub.f32 %v824, %v730
        %v955 = vsub.f32 %v824, %v731
        %v956 = vsub.f32 %v829, %v732
        %v957 = vsub.f32 %v829, %v733
        %v958 = vsub.f32 %v834, %v734
        %v959 = vsub.f32 %v834, %v735
        %v960 = vsub.f32 %v839, %v736
        %v961 = vsub.f32 %v839, %v737
        %v962 = vsub.f32 %v844, %v738
        %v963 = vsub.f32 %v844, %v739
        %v964 = vsub.f32 %v849, %v740
        %v965 = vsub.f32 %v849, %v741
        %v966 = vsub.f32 %v854, %v742
        %v967 = vsub.f32 %v854, %v743
        %v968 = vsub.f32 %v859, %v744
        %v969 = vsub.f32 %v859, %v745
        %v970 = vsub.f32 %v864, %v746
        %v971 = vsub.f32 %v864, %v747
        %v972 = vsub.f32 %v869, %v748
        %v973 = vsub.f32 %v869, %v749
        %v974 = vsub.f32 %v874, %v750
        %v975 = vsub.f32 %v874, %v751
        %v976 = vsub.f32 %v879, %v752
        %v977 = vsub.f32 %v879, %v753
        %v978 = vsub.f32 %v884, %v754
        %v979 = vsub.f32 %v884, %v755
        %v980 = vsub.f32 %v889, %v756
        %v981 = vsub.f32 %v889, %v757
        %v982 = vsub.f32 %v894, %v758
        %v983 = vsub.f32 %v894, %v759
        %v984 = vsub.f32 %v899, %v760
        %v985 = vsub.f32 %v899, %v761
        %v986 = vsub.f32 %v904, %v762
        %v987 = vsub.f32 %v904, %v763
        %v988 = vsub.f32 %v909, %v764
        %v989 = vsub.f32 %v909, %v765
        %v990 = vsub.f32 %v914, %v766
        %v991 = vsub.f32 %v914, %v767
        %v992 = vsub.f32 %v919, %v768
        %v993 = vsub.f32 %v919, %v769
        %v994 = vsub.f32 %v924, %v770
        %v995 = vsub.f32 %v924, %v771
        %v996 = vsub.f32 %v929, %v772
        %v997 = vsub.f32 %v929, %v773
        %v998 = vsub.f32 %v934, %v774
        %v999 = vsub.f32 %v934, %v775
        %v1000 = vlaneseq
        %v1001 = vshrl.u32 %v1000, 7
        %v1002 = vadd.s32 %v1001, 8
        %v1003 = vadd.s32 %v1001, 16
        %v1004 = vadd.s32 %v1001, 24
        %v1005 = vadd.s32 %v1001, 32
        %v1006 = vadd.s32 %v1001, 40
        %v1007 = vadd.s32 %v1001, 48
        %v1008 = vadd.s32 %v1001, 56
        %v1009 = vadd.s32 %v1001, 64
        %v1010 = vadd.s32 %v1001, 72
        %v1011 = vadd.s32 %v1001, 80
        %v1012 = vadd.s32 %v1001, 88
        %v1013 = vadd.s32 %v1001, 96
        %v1014 = vadd.s32 %v1001, 104
        %v1015 = vadd.s32 %v1001, 112
        %v1016 = vadd.s32 %v1001, 120
        %v1017 = vadd.s32 %v1001, 128
        %v1018 = vadd.s32 %v1001, 136
        %v1019 = vadd.s32 %v1001, 144
        %v1020 = vadd.s32 %v1001, 152
        %v1021 = vadd.s32 %v1001, 160
        %v1022 = vadd.s32 %v1001, 168
        %v1023 = vadd.s32 %v1001, 176
        %v1024 = vadd.s32 %v1001, 184
        %v1025 = vadd.s32 %v1001, 192
        %v1026 = vadd.s32 %v1001, 200
        %v1027 = vadd.s32 %v1001, 208
        %v1028 = vadd.s32 %v1001, 216
        %v1029 = vadd.s32 %v1001, 224
        %v1030 = vadd.s32 %v1001, 232
        %v1031 = vadd.s32 %v1001, 240
        %v1032 = vadd.s32 %v1001, 248
        %v1033 = vmin.f32 %v936, %v940
        %v1034 = vmin.f32 %v938, %v942
        %v1035 = vmin.f32 %v1033, %v944
        %v1036 = vmin.f32 %v1034, %v946
        %v1037 = vmin.f32 %v1035, %v948
        %v1038 = vmin.f32 %v1036, %v950
        %v1039 = vmin.f32 %v1037, %v952
        %v1040 = vmin.f32 %v1038, %v954
        %v1041 = vmin.f32 %v1039, %v956
        %v1042 = vmin.f32 %v1040, %v958
        %v1043 = vmin.f32 %v1041, %v960
        %v1044 = vmin.f32 %v1042, %v962
        %v1045 = vmin.f32 %v1043, %v964
        %v1046 = vmin.f32 %v1044, %v966
        %v1047 = vmin.f32 %v1045, %v968
        %v1048 = vmin.f32 %v1046, %v970
        %v1049 = vmin.f32 %v1047, %v972
        %v1050 = vmin.f32 %v1048, %v974
        %v1051 = vmin.f32 %v1049, %v976
        %v1052 = vmin.f32 %v1050, %v978
        %v1053 = vmin.f32 %v1051, %v980
        %v1054 = vmin.f32 %v1052, %v982
        %v1055 = vmin.f32 %v1053, %v984
        %v1056 = vmin.f32 %v1054, %v986
        %v1057 = vmin.f32 %v1055, %v988
        %v1058 = vmin.f32 %v1056, %v990
        %v1059 = vmin.f32 %v1057, %v992
        %v1060 = vmin.f32 %v1058, %v994
        %v1061 = vmin.f32 %v1059, %v996
        %v1062 = vmin.f32 %v1060, %v998
        %v1063 = vmin.f32 %v1061, %v1062
        %v1064 = vrot.slane %v1063, 4
        %v1065 = vmin.f32 %v1063, %v1064
        %v1066 = vrot.slane %v1065, 2
        %v1067 = vmin.f32 %v1065, %v1066
        %v1068 = vrot.slane %v1067, 1
        %v1069 = vmin.f32 %v1067, %v1068
        %v1070 = vmin.f32 %v937, %v941
        %v1071 = vmin.f32 %v939, %v943
        %v1072 = vmin.f32 %v1070, %v945
        %v1073 = vmin.f32 %v1071, %v947
        %v1074 = vmin.f32 %v1072, %v949
        %v1075 = vmin.f32 %v1073, %v951
        %v1076 = vmin.f32 %v1074, %v953
        %v1077 = vmin.f32 %v1075, %v955
        %v1078 = vmin.f32 %v1076, %v957
        %v1079 = vmin.f32 %v1077, %v959
        %v1080 = vmin.f32 %v1078, %v961
        %v1081 = vmin.f32 %v1079, %v963
        %v1082 = vmin.f32 %v1080, %v965
        %v1083 = vmin.f32 %v1081, %v967
        %v1084 = vmin.f32 %v1082, %v969
        %v1085 = vmin.f32 %v1083, %v971
        %v1086 = vmin.f32 %v1084, %v973
        %v1087 = vmin.f32 %v1085, %v975
        %v1088 = vmin.f32 %v1086, %v977
        %v1089 = vmin.f32 %v1087, %v979
        %v1090 = vmin.f32 %v1088, %v981
        %v1091 = vmin.f32 %v1089, %v983
        %v1092 = vmin.f32 %v1090, %v985
        %v1093 = vmin.f32 %v1091, %v987
        %v1094 = vmin.f32 %v1092, %v989
        %v1095 = vmin.f32 %v1093, %v991
        %v1096 = vmin.f32 %v1094, %v993
        %v1097 = vmin.f32 %v1095, %v995
        %v1098 = vmin.f32 %v1096, %v997
        %v1099 = vmin.f32 %v1097, %v999
        %v1100 = vmin.f32 %v1098, %v1099
        %v1101 = vrot.slane %v1100, 4
        %v1102 = vmin.f32 %v1100, %v1101
        %v1103 = vrot.slane %v1102, 2
        %v1104 = vmin.f32 %v1102, %v1103
        %v1105 = vrot.slane %v1104, 1
        %v1106 = vmin.f32 %v1104, %v1105
        %vm1107 = vcmp.eq.f32.partialorder %v936, %v1069
        %vm1108 = vcmp.eq.f32.partialorder %v937, %v1106
        %vm1109 = vcmp.eq.f32.partialorder %v938, %v1069
        %vm1110 = vcmp.eq.f32.partialorder %v939, %v1106
        %vm1111 = vcmp.eq.f32.partialorder %v940, %v1069
        %vm1112 = vcmp.eq.f32.partialorder %v941, %v1106
        %vm1113 = vcmp.eq.f32.partialorder %v942, %v1069
        %vm1114 = vcmp.eq.f32.partialorder %v943, %v1106
        %vm1115 = vcmp.eq.f32.partialorder %v944, %v1069
        %vm1116 = vcmp.eq.f32.partialorder %v945, %v1106
        %vm1117 = vcmp.eq.f32.partialorder %v946, %v1069
        %vm1118 = vcmp.eq.f32.partialorder %v947, %v1106
        %vm1119 = vcmp.eq.f32.partialorder %v948, %v1069
        %vm1120 = vcmp.eq.f32.partialorder %v949, %v1106
        %vm1121 = vcmp.eq.f32.partialorder %v950, %v1069
        %vm1122 = vcmp.eq.f32.partialorder %v951, %v1106
        %vm1123 = vcmp.eq.f32.partialorder %v952, %v1069
        %vm1124 = vcmp.eq.f32.partialorder %v953, %v1106
        %vm1125 = vcmp.eq.f32.partialorder %v954, %v1069
        %vm1126 = vcmp.eq.f32.partialorder %v955, %v1106
        %vm1127 = vcmp.eq.f32.partialorder %v956, %v1069
        %vm1128 = vcmp.eq.f32.partialorder %v957, %v1106
        %vm1129 = vcmp.eq.f32.partialorder %v958, %v1069
        %vm1130 = vcmp.eq.f32.partialorder %v959, %v1106
        %vm1131 = vcmp.eq.f32.partialorder %v960, %v1069
        %vm1132 = vcmp.eq.f32.partialorder %v961, %v1106
        %vm1133 = vcmp.eq.f32.partialorder %v962, %v1069
        %vm1134 = vcmp.eq.f32.partialorder %v963, %v1106
        %vm1135 = vcmp.eq.f32.partialorder %v964, %v1069
        %vm1136 = vcmp.eq.f32.partialorder %v965, %v1106
        %vm1137 = vcmp.eq.f32.partialorder %v966, %v1069
        %vm1138 = vcmp.eq.f32.partialorder %v967, %v1106
        %vm1139 = vcmp.eq.f32.partialorder %v968, %v1069
        %vm1140 = vcmp.eq.f32.partialorder %v969, %v1106
        %vm1141 = vcmp.eq.f32.partialorder %v970, %v1069
        %vm1142 = vcmp.eq.f32.partialorder %v971, %v1106
        %vm1143 = vcmp.eq.f32.partialorder %v972, %v1069
        %vm1144 = vcmp.eq.f32.partialorder %v973, %v1106
        %vm1145 = vcmp.eq.f32.partialorder %v974, %v1069
        %vm1146 = vcmp.eq.f32.partialorder %v975, %v1106
        %vm1147 = vcmp.eq.f32.partialorder %v976, %v1069
        %vm1148 = vcmp.eq.f32.partialorder %v977, %v1106
        %vm1149 = vcmp.eq.f32.partialorder %v978, %v1069
        %vm1150 = vcmp.eq.f32.partialorder %v979, %v1106
        %vm1151 = vcmp.eq.f32.partialorder %v980, %v1069
        %vm1152 = vcmp.eq.f32.partialorder %v981, %v1106
        %vm1153 = vcmp.eq.f32.partialorder %v982, %v1069
        %vm1154 = vcmp.eq.f32.partialorder %v983, %v1106
        %vm1155 = vcmp.eq.f32.partialorder %v984, %v1069
        %vm1156 = vcmp.eq.f32.partialorder %v985, %v1106
        %vm1157 = vcmp.eq.f32.partialorder %v986, %v1069
        %vm1158 = vcmp.eq.f32.partialorder %v987, %v1106
        %vm1159 = vcmp.eq.f32.partialorder %v988, %v1069
        %vm1160 = vcmp.eq.f32.partialorder %v989, %v1106
        %vm1161 = vcmp.eq.f32.partialorder %v990, %v1069
        %vm1162 = vcmp.eq.f32.partialorder %v991, %v1106
        %vm1163 = vcmp.eq.f32.partialorder %v992, %v1069
        %vm1164 = vcmp.eq.f32.partialorder %v993, %v1106
        %vm1165 = vcmp.eq.f32.partialorder %v994, %v1069
        %vm1166 = vcmp.eq.f32.partialorder %v995, %v1106
        %vm1167 = vcmp.eq.f32.partialorder %v996, %v1069
        %vm1168 = vcmp.eq.f32.partialorder %v997, %v1106
        %vm1169 = vcmp.eq.f32.partialorder %v998, %v1069
        %vm1170 = vcmp.eq.f32.partialorder %v999, %v1106
        %v1171 = vsel %vm1107, %v1001, 256
        %v1172 = vsel %vm1108, %v1001, 256
        %v1173 = vsel %vm1109, %v1002, 256
        %v1174 = vsel %vm1110, %v1002, 256
        %v1175 = vsel %vm1111, %v1003, 256
        %v1176 = vsel %vm1112, %v1003, 256
        %v1177 = vsel %vm1113, %v1004, 256
        %v1178 = vsel %vm1114, %v1004, 256
        %v1179 = vsel %vm1115, %v1005, 256
        %v1180 = vsel %vm1116, %v1005, 256
        %v1181 = vsel %vm1117, %v1006, 256
        %v1182 = vsel %vm1118, %v1006, 256
        %v1183 = vsel %vm1119, %v1007, 256
        %v1184 = vsel %vm1120, %v1007, 256
        %v1185 = vsel %vm1121, %v1008, 256
        %v1186 = vsel %vm1122, %v1008, 256
        %v1187 = vsel %vm1123, %v1009, 256
        %v1188 = vsel %vm1124, %v1009, 256
        %v1189 = vsel %vm1125, %v1010, 256
        %v1190 = vsel %vm1126, %v1010, 256
        %v1191 = vsel %vm1127, %v1011, 256
        %v1192 = vsel %vm1128, %v1011, 256
        %v1193 = vsel %vm1129, %v1012, 256
        %v1194 = vsel %vm1130, %v1012, 256
        %v1195 = vsel %vm1131, %v1013, 256
        %v1196 = vsel %vm1132, %v1013, 256
        %v1197 = vsel %vm1133, %v1014, 256
        %v1198 = vsel %vm1134, %v1014, 256
        %v1199 = vsel %vm1135, %v1015, 256
        %v1200 = vsel %vm1136, %v1015, 256
        %v1201 = vsel %vm1137, %v1016, 256
        %v1202 = vsel %vm1138, %v1016, 256
        %v1203 = vsel %vm1139, %v1017, 256
        %v1204 = vsel %vm1140, %v1017, 256
        %v1205 = vsel %vm1141, %v1018, 256
        %v1206 = vsel %vm1142, %v1018, 256
        %v1207 = vsel %vm1143, %v1019, 256
        %v1208 = vsel %vm1144, %v1019, 256
        %v1209 = vsel %vm1145, %v1020, 256
        %v1210 = vsel %vm1146, %v1020, 256
        %v1211 = vsel %vm1147, %v1021, 256
        %v1212 = vsel %vm1148, %v1021, 256
        %v1213 = vsel %vm1149, %v1022, 256
        %v1214 = vsel %vm1150, %v1022, 256
        %v1215 = vsel %vm1151, %v1023, 256
        %v1216 = vsel %vm1152, %v1023, 256
        %v1217 = vsel %vm1153, %v1024, 256
        %v1218 = vsel %vm1154, %v1024, 256
        %v1219 = vsel %vm1155, %v1025, 256
        %v1220 = vsel %vm1156, %v1025, 256
        %v1221 = vsel %vm1157, %v1026, 256
        %v1222 = vsel %vm1158, %v1026, 256
        %v1223 = vsel %vm1159, %v1027, 256
        %v1224 = vsel %vm1160, %v1027, 256
        %v1225 = vsel %vm1161, %v1028, 256
        %v1226 = vsel %vm1162, %v1028, 256
        %v1227 = vsel %vm1163, %v1029, 256
        %v1228 = vsel %vm1164, %v1029, 256
        %v1229 = vsel %vm1165, %v1030, 256
        %v1230 = vsel %vm1166, %v1030, 256
        %v1231 = vsel %vm1167, %v1031, 256
        %v1232 = vsel %vm1168, %v1031, 256
        %v1233 = vsel %vm1169, %v1032, 256
        %v1234 = vsel %vm1170, %v1032, 256
        %vm1235 = vcmp.lt.s32.totalorder %v1171, %v1175
        %v1236 = vsel %vm1235, %v1171, %v1175
        %vm1237 = vcmp.lt.s32.totalorder %v1173, %v1177
        %v1238 = vsel %vm1237, %v1173, %v1177
        %vm1239 = vcmp.lt.s32.totalorder %v1236, %v1179
        %v1240 = vsel %vm1239, %v1236, %v1179
        %vm1241 = vcmp.lt.s32.totalorder %v1238, %v1181
        %v1242 = vsel %vm1241, %v1238, %v1181
        %vm1243 = vcmp.lt.s32.totalorder %v1240, %v1183
        %v1244 = vsel %vm1243, %v1240, %v1183
        %vm1245 = vcmp.lt.s32.totalorder %v1242, %v1185
        %v1246 = vsel %vm1245, %v1242, %v1185
        %vm1247 = vcmp.lt.s32.totalorder %v1244, %v1187
        %v1248 = vsel %vm1247, %v1244, %v1187
        %vm1249 = vcmp.lt.s32.totalorder %v1246, %v1189
        %v1250 = vsel %vm1249, %v1246, %v1189
        %vm1251 = vcmp.lt.s32.totalorder %v1248, %v1191
        %v1252 = vsel %vm1251, %v1248, %v1191
        %vm1253 = vcmp.lt.s32.totalorder %v1250, %v1193
        %v1254 = vsel %vm1253, %v1250, %v1193
        %vm1255 = vcmp.lt.s32.totalorder %v1252, %v1195
        %v1256 = vsel %vm1255, %v1252, %v1195
        %vm1257 = vcmp.lt.s32.totalorder %v1254, %v1197
        %v1258 = vsel %vm1257, %v1254, %v1197
        %vm1259 = vcmp.lt.s32.totalorder %v1256, %v1199
        %v1260 = vsel %vm1259, %v1256, %v1199
        %vm1261 = vcmp.lt.s32.totalorder %v1258, %v1201
        %v1262 = vsel %vm1261, %v1258, %v1201
        %vm1263 = vcmp.lt.s32.totalorder %v1260, %v1203
        %v1264 = vsel %vm1263, %v1260, %v1203
        %vm1265 = vcmp.lt.s32.totalorder %v1262, %v1205
        %v1266 = vsel %vm1265, %v1262, %v1205
        %vm1267 = vcmp.lt.s32.totalorder %v1264, %v1207
        %v1268 = vsel %vm1267, %v1264, %v1207
        %vm1269 = vcmp.lt.s32.totalorder %v1266, %v1209
        %v1270 = vsel %vm1269, %v1266, %v1209
        %vm1271 = vcmp.lt.s32.totalorder %v1268, %v1211
        %v1272 = vsel %vm1271, %v1268, %v1211
        %vm1273 = vcmp.lt.s32.totalorder %v1270, %v1213
        %v1274 = vsel %vm1273, %v1270, %v1213
        %vm1275 = vcmp.lt.s32.totalorder %v1272, %v1215
        %v1276 = vsel %vm1275, %v1272, %v1215
        %vm1277 = vcmp.lt.s32.totalorder %v1274, %v1217
        %v1278 = vsel %vm1277, %v1274, %v1217
        %vm1279 = vcmp.lt.s32.totalorder %v1276, %v1219
        %v1280 = vsel %vm1279, %v1276, %v1219
        %vm1281 = vcmp.lt.s32.totalorder %v1278, %v1221
        %v1282 = vsel %vm1281, %v1278, %v1221
        %vm1283 = vcmp.lt.s32.totalorder %v1280, %v1223
        %v1284 = vsel %vm1283, %v1280, %v1223
        %vm1285 = vcmp.lt.s32.totalorder %v1282, %v1225
        %v1286 = vsel %vm1285, %v1282, %v1225
        %vm1287 = vcmp.lt.s32.totalorder %v1284, %v1227
        %v1288 = vsel %vm1287, %v1284, %v1227
        %vm1289 = vcmp.lt.s32.totalorder %v1286, %v1229
        %v1290 = vsel %vm1289, %v1286, %v1229
        %vm1291 = vcmp.lt.s32.totalorder %v1288, %v1231
        %v1292 = vsel %vm1291, %v1288, %v1231
        %vm1293 = vcmp.lt.s32.totalorder %v1290, %v1233
        %v1294 = vsel %vm1293, %v1290, %v1233
        %vm1295 = vcmp.lt.s32.totalorder %v1292, %v1294
        %v1296 = vsel %vm1295, %v1292, %v1294
        %v1297 = vrot.slane %v1296, 4
        %vm1298 = vcmp.lt.s32.totalorder %v1296, %v1297
        %v1299 = vsel %vm1298, %v1296, %v1297
        %v1300 = vrot.slane %v1299, 2
        %vm1301 = vcmp.lt.s32.totalorder %v1299, %v1300
        %v1302 = vsel %vm1301, %v1299, %v1300
        %v1303 = vrot.slane %v1302, 1
        %vm1304 = vcmp.lt.s32.totalorder %v1302, %v1303
        %v1305 = vsel %vm1304, %v1302, %v1303
        %vm1306 = vcmp.lt.s32.totalorder %v1172, %v1176
        %v1307 = vsel %vm1306, %v1172, %v1176
        %vm1308 = vcmp.lt.s32.totalorder %v1174, %v1178
        %v1309 = vsel %vm1308, %v1174, %v1178
        %vm1310 = vcmp.lt.s32.totalorder %v1307, %v1180
        %v1311 = vsel %vm1310, %v1307, %v1180
        %vm1312 = vcmp.lt.s32.totalorder %v1309, %v1182
        %v1313 = vsel %vm1312, %v1309, %v1182
        %vm1314 = vcmp.lt.s32.totalorder %v1311, %v1184
        %v1315 = vsel %vm1314, %v1311, %v1184
        %vm1316 = vcmp.lt.s32.totalorder %v1313, %v1186
        %v1317 = vsel %vm1316, %v1313, %v1186
        %vm1318 = vcmp.lt.s32.totalorder %v1315, %v1188
        %v1319 = vsel %vm1318, %v1315, %v1188
        %vm1320 = vcmp.lt.s32.totalorder %v1317, %v1190
        %v1321 = vsel %vm1320, %v1317, %v1190
        %vm1322 = vcmp.lt.s32.totalorder %v1319, %v1192
        %v1323 = vsel %vm1322, %v1319, %v1192
        %vm1324 = vcmp.lt.s32.totalorder %v1321, %v1194
        %v1325 = vsel %vm1324, %v1321, %v1194
        %vm1326 = vcmp.lt.s32.totalorder %v1323, %v1196
        %v1327 = vsel %vm1326, %v1323, %v1196
        %vm1328 = vcmp.lt.s32.totalorder %v1325, %v1198
        %v1329 = vsel %vm1328, %v1325, %v1198
        %vm1330 = vcmp.lt.s32.totalorder %v1327, %v1200
        %v1331 = vsel %vm1330, %v1327, %v1200
        %vm1332 = vcmp.lt.s32.totalorder %v1329, %v1202
        %v1333 = vsel %vm1332, %v1329, %v1202
        %vm1334 = vcmp.lt.s32.totalorder %v1331, %v1204
        %v1335 = vsel %vm1334, %v1331, %v1204
        %vm1336 = vcmp.lt.s32.totalorder %v1333, %v1206
        %v1337 = vsel %vm1336, %v1333, %v1206
        %vm1338 = vcmp.lt.s32.totalorder %v1335, %v1208
        %v1339 = vsel %vm1338, %v1335, %v1208
        %vm1340 = vcmp.lt.s32.totalorder %v1337, %v1210
        %v1341 = vsel %vm1340, %v1337, %v1210
        %vm1342 = vcmp.lt.s32.totalorder %v1339, %v1212
        %v1343 = vsel %vm1342, %v1339, %v1212
        %vm1344 = vcmp.lt.s32.totalorder %v1341, %v1214
        %v1345 = vsel %vm1344, %v1341, %v1214
        %vm1346 = vcmp.lt.s32.totalorder %v1343, %v1216
        %v1347 = vsel %vm1346, %v1343, %v1216
        %vm1348 = vcmp.lt.s32.totalorder %v1345, %v1218
        %v1349 = vsel %vm1348, %v1345, %v1218
        %vm1350 = vcmp.lt.s32.totalorder %v1347, %v1220
        %v1351 = vsel %vm1350, %v1347, %v1220
        %vm1352 = vcmp.lt.s32.totalorder %v1349, %v1222
        %v1353 = vsel %vm1352, %v1349, %v1222
        %vm1354 = vcmp.lt.s32.totalorder %v1351, %v1224
        %v1355 = vsel %vm1354, %v1351, %v1224
        %vm1356 = vcmp.lt.s32.totalorder %v1353, %v1226
        %v1357 = vsel %vm1356, %v1353, %v1226
        %vm1358 = vcmp.lt.s32.totalorder %v1355, %v1228
        %v1359 = vsel %vm1358, %v1355, %v1228
        %vm1360 = vcmp.lt.s32.totalorder %v1357, %v1230
        %v1361 = vsel %vm1360, %v1357, %v1230
        %vm1362 = vcmp.lt.s32.totalorder %v1359, %v1232
        %v1363 = vsel %vm1362, %v1359, %v1232
        %vm1364 = vcmp.lt.s32.totalorder %v1361, %v1234
        %v1365 = vsel %vm1364, %v1361, %v1234
        %vm1366 = vcmp.lt.s32.totalorder %v1363, %v1365
        %v1367 = vsel %vm1366, %v1363, %v1365
        %v1368 = vrot.slane %v1367, 4
        %vm1369 = vcmp.lt.s32.totalorder %v1367, %v1368
        %v1370 = vsel %vm1369, %v1367, %v1368
        %v1371 = vrot.slane %v1370, 2
        %vm1372 = vcmp.lt.s32.totalorder %v1370, %v1371
        %v1373 = vsel %vm1372, %v1370, %v1371
        %v1374 = vrot.slane %v1373, 1
        %vm1375 = vcmp.lt.s32.totalorder %v1373, %v1374
        %v1376 = vsel %vm1375, %v1373, %v1374
        %vm1377 = vcmp.eq.s32.totalorder %v1001, %v1305
        %vm1378 = vcmp.eq.s32.totalorder %v1001, %v1376
        %vm1379 = vcmp.eq.s32.totalorder %v1002, %v1305
        %vm1380 = vcmp.eq.s32.totalorder %v1002, %v1376
        %vm1381 = vcmp.eq.s32.totalorder %v1003, %v1305
        %vm1382 = vcmp.eq.s32.totalorder %v1003, %v1376
        %vm1383 = vcmp.eq.s32.totalorder %v1004, %v1305
        %vm1384 = vcmp.eq.s32.totalorder %v1004, %v1376
        %vm1385 = vcmp.eq.s32.totalorder %v1005, %v1305
        %vm1386 = vcmp.eq.s32.totalorder %v1005, %v1376
        %vm1387 = vcmp.eq.s32.totalorder %v1006, %v1305
        %vm1388 = vcmp.eq.s32.totalorder %v1006, %v1376
        %vm1389 = vcmp.eq.s32.totalorder %v1007, %v1305
        %vm1390 = vcmp.eq.s32.totalorder %v1007, %v1376
        %vm1391 = vcmp.eq.s32.totalorder %v1008, %v1305
        %vm1392 = vcmp.eq.s32.totalorder %v1008, %v1376
        %vm1393 = vcmp.eq.s32.totalorder %v1009, %v1305
        %vm1394 = vcmp.eq.s32.totalorder %v1009, %v1376
        %vm1395 = vcmp.eq.s32.totalorder %v1010, %v1305
        %vm1396 = vcmp.eq.s32.totalorder %v1010, %v1376
        %vm1397 = vcmp.eq.s32.totalorder %v1011, %v1305
        %vm1398 = vcmp.eq.s32.totalorder %v1011, %v1376
        %vm1399 = vcmp.eq.s32.totalorder %v1012, %v1305
        %vm1400 = vcmp.eq.s32.totalorder %v1012, %v1376
        %vm1401 = vcmp.eq.s32.totalorder %v1013, %v1305
        %vm1402 = vcmp.eq.s32.totalorder %v1013, %v1376
        %vm1403 = vcmp.eq.s32.totalorder %v1014, %v1305
        %vm1404 = vcmp.eq.s32.totalorder %v1014, %v1376
        %vm1405 = vcmp.eq.s32.totalorder %v1015, %v1305
        %vm1406 = vcmp.eq.s32.totalorder %v1015, %v1376
        %vm1407 = vcmp.eq.s32.totalorder %v1016, %v1305
        %vm1408 = vcmp.eq.s32.totalorder %v1016, %v1376
        %vm1409 = vcmp.eq.s32.totalorder %v1017, %v1305
        %vm1410 = vcmp.eq.s32.totalorder %v1017, %v1376
        %vm1411 = vcmp.eq.s32.totalorder %v1018, %v1305
        %vm1412 = vcmp.eq.s32.totalorder %v1018, %v1376
        %vm1413 = vcmp.eq.s32.totalorder %v1019, %v1305
        %vm1414 = vcmp.eq.s32.totalorder %v1019, %v1376
        %vm1415 = vcmp.eq.s32.totalorder %v1020, %v1305
        %vm1416 = vcmp.eq.s32.totalorder %v1020, %v1376
        %vm1417 = vcmp.eq.s32.totalorder %v1021, %v1305
        %vm1418 = vcmp.eq.s32.totalorder %v1021, %v1376
        %vm1419 = vcmp.eq.s32.totalorder %v1022, %v1305
        %vm1420 = vcmp.eq.s32.totalorder %v1022, %v1376
        %vm1421 = vcmp.eq.s32.totalorder %v1023, %v1305
        %vm1422 = vcmp.eq.s32.totalorder %v1023, %v1376
        %vm1423 = vcmp.eq.s32.totalorder %v1024, %v1305
        %vm1424 = vcmp.eq.s32.totalorder %v1024, %v1376
        %vm1425 = vcmp.eq.s32.totalorder %v1025, %v1305
        %vm1426 = vcmp.eq.s32.totalorder %v1025, %v1376
        %vm1427 = vcmp.eq.s32.totalorder %v1026, %v1305
        %vm1428 = vcmp.eq.s32.totalorder %v1026, %v1376
        %vm1429 = vcmp.eq.s32.totalorder %v1027, %v1305
        %vm1430 = vcmp.eq.s32.totalorder %v1027, %v1376
        %vm1431 = vcmp.eq.s32.totalorder %v1028, %v1305
        %vm1432 = vcmp.eq.s32.totalorder %v1028, %v1376
        %vm1433 = vcmp.eq.s32.totalorder %v1029, %v1305
        %vm1434 = vcmp.eq.s32.totalorder %v1029, %v1376
        %vm1435 = vcmp.eq.s32.totalorder %v1030, %v1305
        %vm1436 = vcmp.eq.s32.totalorder %v1030, %v1376
        %vm1437 = vcmp.eq.s32.totalorder %v1031, %v1305
        %vm1438 = vcmp.eq.s32.totalorder %v1031, %v1376
        %vm1439 = vcmp.eq.s32.totalorder %v1032, %v1305
        %vm1440 = vcmp.eq.s32.totalorder %v1032, %v1376
        %v1441 = vsel %vm1377, 1, 0
        %v1442 = vsel %vm1378, 1, 0
        %v1443 = vsel %vm1379, 1, 0
        %v1444 = vsel %vm1380, 1, 0
        %v1445 = vsel %vm1381, 1, 0
        %v1446 = vsel %vm1382, 1, 0
        %v1447 = vsel %vm1383, 1, 0
        %v1448 = vsel %vm1384, 1, 0
        %v1449 = vsel %vm1385, 1, 0
        %v1450 = vsel %vm1386, 1, 0
        %v1451 = vsel %vm1387, 1, 0
        %v1452 = vsel %vm1388, 1, 0
        %v1453 = vsel %vm1389, 1, 0
        %v1454 = vsel %vm1390, 1, 0
        %v1455 = vsel %vm1391, 1, 0
        %v1456 = vsel %vm1392, 1, 0
        %v1457 = vsel %vm1393, 1, 0
        %v1458 = vsel %vm1394, 1, 0
        %v1459 = vsel %vm1395, 1, 0
        %v1460 = vsel %vm1396, 1, 0
        %v1461 = vsel %vm1397, 1, 0
        %v1462 = vsel %vm1398, 1, 0
        %v1463 = vsel %vm1399, 1, 0
        %v1464 = vsel %vm1400, 1, 0
        %v1465 = vsel %vm1401, 1, 0
        %v1466 = vsel %vm1402, 1, 0
        %v1467 = vsel %vm1403, 1, 0
        %v1468 = vsel %vm1404, 1, 0
        %v1469 = vsel %vm1405, 1, 0
        %v1470 = vsel %vm1406, 1, 0
        %v1471 = vsel %vm1407, 1, 0
        %v1472 = vsel %vm1408, 1, 0
        %v1473 = vsel %vm1409, 1, 0
        %v1474 = vsel %vm1410, 1, 0
        %v1475 = vsel %vm1411, 1, 0
        %v1476 = vsel %vm1412, 1, 0
        %v1477 = vsel %vm1413, 1, 0
        %v1478 = vsel %vm1414, 1, 0
        %v1479 = vsel %vm1415, 1, 0
        %v1480 = vsel %vm1416, 1, 0
        %v1481 = vsel %vm1417, 1, 0
        %v1482 = vsel %vm1418, 1, 0
        %v1483 = vsel %vm1419, 1, 0
        %v1484 = vsel %vm1420, 1, 0
        %v1485 = vsel %vm1421, 1, 0
        %v1486 = vsel %vm1422, 1, 0
        %v1487 = vsel %vm1423, 1, 0
        %v1488 = vsel %vm1424, 1, 0
        %v1489 = vsel %vm1425, 1, 0
        %v1490 = vsel %vm1426, 1, 0
        %v1491 = vsel %vm1427, 1, 0
        %v1492 = vsel %vm1428, 1, 0
        %v1493 = vsel %vm1429, 1, 0
        %v1494 = vsel %vm1430, 1, 0
        %v1495 = vsel %vm1431, 1, 0
        %v1496 = vsel %vm1432, 1, 0
        %v1497 = vsel %vm1433, 1, 0
        %v1498 = vsel %vm1434, 1, 0
        %v1499 = vsel %vm1435, 1, 0
        %v1500 = vsel %vm1436, 1, 0
        %v1501 = vsel %vm1437, 1, 0
        %v1502 = vsel %vm1438, 1, 0
        %v1503 = vsel %vm1439, 1, 0
        %v1504 = vsel %vm1440, 1, 0
        %v1505 = vcvt.s32.f32 %v1441
        %v1506 = vcvt.s32.f32 %v1442
        %v1507 = vcvt.s32.f32 %v1443
        %v1508 = vcvt.s32.f32 %v1444
        %v1509 = vcvt.s32.f32 %v1445
        %v1510 = vcvt.s32.f32 %v1446
        %v1511 = vcvt.s32.f32 %v1447
        %v1512 = vcvt.s32.f32 %v1448
        %v1513 = vcvt.s32.f32 %v1449
        %v1514 = vcvt.s32.f32 %v1450
        %v1515 = vcvt.s32.f32 %v1451
        %v1516 = vcvt.s32.f32 %v1452
        %v1517 = vcvt.s32.f32 %v1453
        %v1518 = vcvt.s32.f32 %v1454
        %v1519 = vcvt.s32.f32 %v1455
        %v1520 = vcvt.s32.f32 %v1456
        %v1521 = vcvt.s32.f32 %v1457
        %v1522 = vcvt.s32.f32 %v1458
        %v1523 = vcvt.s32.f32 %v1459
        %v1524 = vcvt.s32.f32 %v1460
        %v1525 = vcvt.s32.f32 %v1461
        %v1526 = vcvt.s32.f32 %v1462
        %v1527 = vcvt.s32.f32 %v1463
        %v1528 = vcvt.s32.f32 %v1464
        %v1529 = vcvt.s32.f32 %v1465
        %v1530 = vcvt.s32.f32 %v1466
        %v1531 = vcvt.s32.f32 %v1467
        %v1532 = vcvt.s32.f32 %v1468
        %v1533 = vcvt.s32.f32 %v1469
        %v1534 = vcvt.s32.f32 %v1470
        %v1535 = vcvt.s32.f32 %v1471
        %v1536 = vcvt.s32.f32 %v1472
        %v1537 = vcvt.s32.f32 %v1473
        %v1538 = vcvt.s32.f32 %v1474
        %v1539 = vcvt.s32.f32 %v1475
        %v1540 = vcvt.s32.f32 %v1476
        %v1541 = vcvt.s32.f32 %v1477
        %v1542 = vcvt.s32.f32 %v1478
        %v1543 = vcvt.s32.f32 %v1479
        %v1544 = vcvt.s32.f32 %v1480
        %v1545 = vcvt.s32.f32 %v1481
        %v1546 = vcvt.s32.f32 %v1482
        %v1547 = vcvt.s32.f32 %v1483
        %v1548 = vcvt.s32.f32 %v1484
        %v1549 = vcvt.s32.f32 %v1485
        %v1550 = vcvt.s32.f32 %v1486
        %v1551 = vcvt.s32.f32 %v1487
        %v1552 = vcvt.s32.f32 %v1488
        %v1553 = vcvt.s32.f32 %v1489
        %v1554 = vcvt.s32.f32 %v1490
        %v1555 = vcvt.s32.f32 %v1491
        %v1556 = vcvt.s32.f32 %v1492
        %v1557 = vcvt.s32.f32 %v1493
        %v1558 = vcvt.s32.f32 %v1494
        %v1559 = vcvt.s32.f32 %v1495
        %v1560 = vcvt.s32.f32 %v1496
        %v1561 = vcvt.s32.f32 %v1497
        %v1562 = vcvt.s32.f32 %v1498
        %v1563 = vcvt.s32.f32 %v1499
        %v1564 = vcvt.s32.f32 %v1500
        %v1565 = vcvt.s32.f32 %v1501
        %v1566 = vcvt.s32.f32 %v1502
        %v1567 = vcvt.s32.f32 %v1503
        %v1568 = vcvt.s32.f32 %v1504
        %1569 = vmatpush.msra.mxu0 %v1535
        %1570 = vmatpush.msra.mxu0 %v1533
        %1571 = vmatpush.msra.mxu0 %v1531
        %1572 = vmatpush.msra.mxu0 %v1529
        %1573 = vmatpush.msra.mxu0 %v1527
        %1574 = vmatpush.msra.mxu0 %v1525
        %1575 = vmatpush.msra.mxu0 %v1523
        %1576 = vmatpush.msra.mxu0 %v1521
        %1577 = vmatpush.msra.mxu0 %v1519
        %1578 = vmatpush.msra.mxu0 %v1517
        %1579 = vmatpush.msra.mxu0 %v1515
        %1580 = vmatpush.msra.mxu0 %v1513
        %1581 = vmatpush.msra.mxu0 %v1511
        %1582 = vmatpush.msra.mxu0 %v1509
        %1583 = vmatpush.msra.mxu0 %v1507
        %1584 = vmatpush.msra.mxu0 %v1505
        %1585 = vmatmul.f32.gmra.mxu0 %v291
        %v1586 = vpop.f32.mrf.mxu0
        %v1587 = vadd.f32 0.0, %v1586
        %1588 = vdwg.mxu0
        %1589 = vmatpush.msra.mxu0 %v1567
        %1590 = vmatpush.msra.mxu0 %v1565
        %1591 = vmatpush.msra.mxu0 %v1563
        %1592 = vmatpush.msra.mxu0 %v1561
        %1593 = vmatpush.msra.mxu0 %v1559
        %1594 = vmatpush.msra.mxu0 %v1557
        %1595 = vmatpush.msra.mxu0 %v1555
        %1596 = vmatpush.msra.mxu0 %v1553
        %1597 = vmatpush.msra.mxu0 %v1551
        %1598 = vmatpush.msra.mxu0 %v1549
        %1599 = vmatpush.msra.mxu0 %v1547
        %1600 = vmatpush.msra.mxu0 %v1545
        %1601 = vmatpush.msra.mxu0 %v1543
        %1602 = vmatpush.msra.mxu0 %v1541
        %1603 = vmatpush.msra.mxu0 %v1539
        %1604 = vmatpush.msra.mxu0 %v1537
        %1605 = vmatmul.f32.gmra.mxu0 %v292
        %v1606 = vpop.f32.mrf.mxu0
        %v1607 = vadd.f32 %v1587, %v1606
        %1608 = vdwg.mxu0
        %1609 = vmatpush.msra.mxu0 %v1536
        %1610 = vmatpush.msra.mxu0 %v1534
        %1611 = vmatpush.msra.mxu0 %v1532
        %1612 = vmatpush.msra.mxu0 %v1530
        %1613 = vmatpush.msra.mxu0 %v1528
        %1614 = vmatpush.msra.mxu0 %v1526
        %1615 = vmatpush.msra.mxu0 %v1524
        %1616 = vmatpush.msra.mxu0 %v1522
        %1617 = vmatpush.msra.mxu0 %v1520
        %1618 = vmatpush.msra.mxu0 %v1518
        %1619 = vmatpush.msra.mxu0 %v1516
        %1620 = vmatpush.msra.mxu0 %v1514
        %1621 = vmatpush.msra.mxu0 %v1512
        %1622 = vmatpush.msra.mxu0 %v1510
        %1623 = vmatpush.msra.mxu0 %v1508
        %1624 = vmatpush.msra.mxu0 %v1506
        %1625 = vmatmul.f32.gmra.mxu0 %v291
        %v1626 = vpop.f32.mrf.mxu0
        %v1627 = vadd.f32 0.0, %v1626
        %1628 = vdwg.mxu0
        %1629 = vmatpush.msra.mxu0 %v1568
        %1630 = vmatpush.msra.mxu0 %v1566
        %1631 = vmatpush.msra.mxu0 %v1564
        %1632 = vmatpush.msra.mxu0 %v1562
        %1633 = vmatpush.msra.mxu0 %v1560
        %1634 = vmatpush.msra.mxu0 %v1558
        %1635 = vmatpush.msra.mxu0 %v1556
        %1636 = vmatpush.msra.mxu0 %v1554
        %1637 = vmatpush.msra.mxu0 %v1552
        %1638 = vmatpush.msra.mxu0 %v1550
        %1639 = vmatpush.msra.mxu0 %v1548
        %1640 = vmatpush.msra.mxu0 %v1546
        %1641 = vmatpush.msra.mxu0 %v1544
        %1642 = vmatpush.msra.mxu0 %v1542
        %1643 = vmatpush.msra.mxu0 %v1540
        %1644 = vmatpush.msra.mxu0 %v1538
        %1645 = vmatmul.f32.gmra.mxu0 %v292
        %v1646 = vpop.f32.mrf.mxu0
        %v1647 = vadd.f32 %v1627, %v1646
        %1648 = vdwg.mxu0
        %1649 = vst [vmem:[%s250] sm:$0xff] %v1607
        %1650 = vst [vmem:[%s250 + $0x8] sm:$0xff] %v1647
        %v1651 = vrot.slane %v1376, 7
        %vm1652 = vcmask 1040384
        %v1653 = vsel %vm1652, %v1305, %v1651
        %v1654 = vlaneseq
        %vm1655 = vcmp.ge.s32.totalorder %v1654, 0
        %vm1656 = vcmp.lt.s32.totalorder %v1654, 256
        %vm1657 = vmand %vm1655, %vm1656
        %1658 = vst.msk [vmem:[%s257] sm:$0x3] %vm1657, %v1653
        %v1659 = vsub.f32 %v1607, %v289
        %v1660 = vsub.f32 %v1647, %v290
        %v1661 = vmul.f32 %v1659, %v1659
        %v1662 = vmul.f32 %v1660, %v1660
        %v1663 = vrot.slane %v1661, 4
        %v1664 = vadd.f32 %v1661, %v1663
        %v1665 = vrot.slane %v1664, 2
        %v1666 = vadd.f32 %v1664, %v1665
        %v1667 = vrot.slane %v1666, 1
        %v1668 = vadd.f32 %v1666, %v1667
        %v1669 = vrot.slane %v1662, 4
        %v1670 = vadd.f32 %v1662, %v1669
        %v1671 = vrot.slane %v1670, 2
        %v1672 = vadd.f32 %v1670, %v1671
        %v1673 = vrot.slane %v1672, 1
        %v1674 = vadd.f32 %v1672, %v1673
        %v1677 = vrot.slane %v1674, 7
        %v1678 = vsel %vm1652, %v1668, %v1677
        %1680 = vst.msk [vmem:[%s287] sm:$0x3] %vm1657, %v1678
        %s1681 = sand.u32 %s115, 1
        %s1682 = scalar_lea.sflag [#allocation3], %s1681
        %s1683 = sand.u32 %s115, 1
        %s1684 = smul.addr %s1683, 16
        %s1685 = scalar_lea.vmem [#allocation2], %s1684
        %s1686 = sand.u32 %s143, 1
        %s1687 = scalar_lea.sflag [#allocation5], %s1686
        %s1688 = sand.u32 %s143, 1
        %s1689 = smul.addr %s1688, 2
        %s1690 = scalar_lea.vmem [#allocation4], %s1689
        %s1691 = smul.u32 2, %s28
        %p1692 = scmp.lt.s32.totalorder %s27, 1
        %s1693 = scalar_select %p1692, %s27, 1
        %p1694 = scmp.lt.s32.totalorder %s1691, 3
        %s1695 = scalar_select %p1694, %s1691, 3
        %s1696 = smul.addr %s1693, 4
        %s1697 = sadd.s32 %s1695, %s1696
        %s1698 = scalar_lea.vmem %s5, %s1697
        // Predicated region
        $region33: #{vector_quantizer_forward.1} parent=31 // pred_check
          %p1699 = pneg %p125
        $region34: #{vector_quantizer_forward.1} parent=31 // pred_check_branch
          %1701 = sbr.rel (%p1699) target = $region36
        $region35: #{vector_quantizer_forward.1} parent=31 // pred_region
          %s1702 = smul.u32 2, %s28
          %1704 = vsyncadd %s1682, 0
          %s1705 = smul.addr %s27, 4
          %s1706 = sadd.s32 %s1702, %s1705
          %s1707 = smul.addr %s1706, 8
          %s1708 = scalar_lea.hbm %s3, %s1707
          %s1710 = sshll.u32 %s1685, 4
          %s1711 = int_to_ptr.vmem [resolvable:$true] %s1710
          %s1712 = sshll.u32 %s1708, 4
          %s1713 = int_to_ptr.hbm [resolvable:$true] %s1712
          %1715 = dma.vmem_to_hbm [thread:$0]  %s1711, 256, %s1713, %s1682
        $region36: #{vector_quantizer_forward.1} parent=31 // pred_fallthru
          _
        // Predicated region
        $region37: #{vector_quantizer_forward.1} parent=31 // pred_check
          %p1716 = pneg %p153
        $region38: #{vector_quantizer_forward.1} parent=31 // pred_check_branch
          %1718 = sbr.rel (%p1716) target = $region40
        $region39: #{vector_quantizer_forward.1} parent=31 // pred_region
          %s1719 = smul.u32 2, %s28
          %1721 = vsyncadd %s1687, 0
          %s1722 = smul.addr %s27, 4
          %s1723 = sadd.s32 %s1719, %s1722
          %s1724 = scalar_lea.hbm %s4, %s1723
          %s1726 = sshll.u32 %s1690, 4
          %s1727 = int_to_ptr.vmem [resolvable:$true] %s1726
          %s1728 = sshll.u32 %s1724, 4
          %s1729 = int_to_ptr.hbm [resolvable:$true] %s1728
          %1731 = dma.vmem_to_hbm [thread:$0]  %s1727, 32, %s1729, %s1687
        $region40: #{vector_quantizer_forward.1} parent=31 // pred_fallthru
          _
        // Predicated region
        $region41: #{vector_quantizer_forward.1} parent=31 // pred_check
          %p1732 = pneg %p181
        $region42: #{vector_quantizer_forward.1} parent=31 // pred_check_branch
          %1734 = sbr.rel (%p1732) target = $region44
        $region43: #{vector_quantizer_forward.1} parent=31 // pred_region
          %s1735 = smul.u32 2, %s28
        $region44: #{vector_quantizer_forward.1} parent=31 // pred_fallthru
          _
      $region32: #{vector_quantizer_forward.1} parent=5 // pred_fallthru
        _
      %p1736 = scmp.le.s32.totalorder 2, %s18
      // Predicated region
      $region45: #{vector_quantizer_forward.1} parent=5 // pred_check
        %p1737 = pneg %p1736
      $region46: #{vector_quantizer_forward.1} parent=5 // pred_check_branch
        %1739 = sbr.rel (%p1737) target = $region48
      $region47: #{vector_quantizer_forward.1} parent=5 // pred_region
        %s1740 = ssub.s32 %s18, 2
        // Predicated region
        $region49: #{vector_quantizer_forward.1} parent=47 // pred_check
          %p1741 = pneg %p131
        $region50: #{vector_quantizer_forward.1} parent=47 // pred_check_branch
          %1743 = sbr.rel (%p1741) target = $region52
        $region51: #{vector_quantizer_forward.1} parent=47 // pred_region
          %s1744 = sand.u32 %s116, 1
          %s1745 = scalar_lea.sflag [#allocation3], %s1744
          %s1746 = sand.u32 %s116, 1
          %s1747 = smul.addr %s1746, 16
          %s1748 = scalar_lea.vmem [#allocation2], %s1747
          %1750 = dma.done %s1745, 256
        $region52: #{vector_quantizer_forward.1} parent=47 // pred_fallthru
          _
        // Predicated region
        $region53: #{vector_quantizer_forward.1} parent=47 // pred_check
          %p1751 = pneg %p159
        $region54: #{vector_quantizer_forward.1} parent=47 // pred_check_branch
          %1753 = sbr.rel (%p1751) target = $region56
        $region55: #{vector_quantizer_forward.1} parent=47 // pred_region
          %s1754 = sand.u32 %s144, 1
          %s1755 = scalar_lea.sflag [#allocation5], %s1754
          %s1756 = sand.u32 %s144, 1
          %s1757 = smul.addr %s1756, 2
          %s1758 = scalar_lea.vmem [#allocation4], %s1757
          %1760 = dma.done %s1755, 32
        $region56: #{vector_quantizer_forward.1} parent=47 // pred_fallthru
          _
        // Predicated region
        $region57: #{vector_quantizer_forward.1} parent=47 // pred_check
          %p1761 = pneg %p187
        $region58: #{vector_quantizer_forward.1} parent=47 // pred_check_branch
          %1763 = sbr.rel (%p1761) target = $region60
        $region59: #{vector_quantizer_forward.1} parent=47 // pred_region
          %s1764 = smul.u32 2, %s30
          %p1765 = scmp.lt.s32.totalorder %s29, 1
          %s1766 = scalar_select %p1765, %s29, 1
          %p1767 = scmp.lt.s32.totalorder %s1764, 3
          %s1768 = scalar_select %p1767, %s1764, 3
          %s1769 = smul.addr %s1766, 4
          %s1770 = sadd.s32 %s1768, %s1769
          %s1771 = scalar_lea.vmem %s5, %s1770
        $region60: #{vector_quantizer_forward.1} parent=47 // pred_fallthru
          _
      $region48: #{vector_quantizer_forward.1} parent=5 // pred_fallthru
        _
    $region6: #{vector_quantizer_forward.1} parent=1 // loop_footer
      %s22 = sadd.s32 1, %s18
    $region7: #{vector_quantizer_forward.1} parent=1 // loop_footer_branch
      %17 = sbr.rel target = $region3
    $region8: #{vector_quantizer_forward.1} parent=1 // loop_exit
      _
    %1772 = vsyncpa [#allocation3], 1
    %s1773 = scalar_lea.sflag [#allocation3], 1
    %1774 = vsyncpa %s1773, 1
    %1775 = vsyncpa [#allocation5], 1
    %s1776 = scalar_lea.sflag [#allocation5], 1
    %1777 = vsyncpa %s1776, 1

</llo_original>
